<compile_context>
chip_gen: v7x
topology: tpu7x:2x2x1
jax: 0.10.0
libtpu: 0.0.40
codegen_flags: <defaults>
</compile_context>

<pallas_src>
import functools

import jax
import jax.numpy as jnp
from jax import lax
from jax.experimental import pallas as pl
from jax.experimental.pallas import tpu as pltpu


def _blstm_kernel(xwf_ref, xwb_ref, whh_ref, out_ref, h_scr, c_scr, *,
                  hidden_size, chunk):
    """Fused bidirectional LSTM recurrence over one time chunk.

    xwf_ref : (CH, Bp, 4H) f32  forward projection, time chunk tc.
    xwb_ref : (CH, Bp, 4H) f32  backward projection, time chunk nc-1-tc
              (stored in forward time order; walked back-to-front here).
    whh_ref : (2, H, 4H) bf16   recurrent weights, both directions.
    out_ref : (CH, Bp, 2H) f32  [:, :, :H] = fwd h(t); [:, :, H:] = bwd h(T-1-t).
    h_scr/c_scr : (2, Bp, H) f32 VMEM carries, persistent across grid steps.

    Gate columns are pre-ordered [i, f, o, g] (sigmoid on 0:3H, tanh on 3H:4H).
    Padded batch rows compute bias-driven garbage h/c but never mix into real
    rows and are sliced off in the wrapper.
    """
    H = hidden_size
    CH = chunk
    tc = pl.program_id(0)

    @pl.when(tc == 0)
    def _():
        h_scr[...] = jnp.zeros_like(h_scr)
        c_scr[...] = jnp.zeros_like(c_scr)

    whh_f = whh_ref[0]   # (H, 4H) bf16, hoisted out of the step loop
    whh_b = whh_ref[1]

    def cell(xw_t, h, c, whh):
        # One MXU op per direction per step: (Bp, H) @ (H, 4H), bf16 in /
        # f32 accumulate.  Gate math stays f32.
        gates = xw_t + jnp.dot(h.astype(jnp.bfloat16), whh,
                               preferred_element_type=jnp.float32)
        s = jax.nn.sigmoid(gates[:, :3 * H])     # [i | f | o]
        g = jnp.tanh(gates[:, 3 * H:])           # [g]
        i_g = s[:, 0 * H:1 * H]
        f_g = s[:, 1 * H:2 * H]
        o_g = s[:, 2 * H:3 * H]
        c_new = f_g * c + i_g * g
        h_new = o_g * jnp.tanh(c_new)
        return h_new, c_new

    def step(s, carry):
        hf, cf, hb, cb = carry
        # Two independent recurrences interleaved -> the scheduler overlaps
        # their MXU/EUP latency on a single TensorCore.
        hf, cf = cell(xwf_ref[s], hf, cf, whh_f)
        hb, cb = cell(xwb_ref[CH - 1 - s], hb, cb, whh_b)
        # One (Bp, 2H) store per step (backward half in reversed time order;
        # un-reversed by the wrapper).
        out_ref[s] = jnp.concatenate([hf, hb], axis=-1)
        return hf, cf, hb, cb

    carry0 = (h_scr[0], c_scr[0], h_scr[1], c_scr[1])
    hf, cf, hb, cb = lax.fori_loop(0, CH, step, carry0, unroll=min(CH, 8))
    h_scr[0] = hf
    c_scr[0] = cf
    h_scr[1] = hb
    c_scr[1] = cb


def _pick_time_chunk(T, max_chunk=16):
    """Largest divisor of T that is <= max_chunk (bounds in-kernel unroll)."""
    for c in range(min(T, max_chunk), 0, -1):
        if T % c == 0:
            return c
    return 1


def blstm_forward(x, params):
    """x: (B, T, I) float32 (batch_first, like PyTorch). Returns (B, T, H)."""
    B, T, I = x.shape
    H = params["w_hh"].shape[1]           # w_hh: (2, H, 4H), PyTorch [i,f,g,o]
    Bp = ((B + 7) // 8) * 8               # pad batch to a sublane multiple
    CH = _pick_time_chunk(T)
    nc = T // CH

    x_p = x if Bp == B else jnp.zeros((Bp, T, I), x.dtype).at[:B].set(x)

    # One-time gate-column reorder [i, f, g, o] -> [i, f, o, g] so the kernel
    # applies sigmoid to a contiguous [0:3H] slab and tanh to [3H:4H].
    def reorder(w):
        return jnp.concatenate(
            [w[..., :2 * H], w[..., 3 * H:], w[..., 2 * H:3 * H]], axis=-1)

    w_ih = reorder(params["w_ih"]).astype(jnp.bfloat16)   # (2, I, 4H)
    w_hh = reorder(params["w_hh"]).astype(jnp.bfloat16)   # (2, H, 4H)
    b = reorder(params["b"])                              # (2, 4H) f32

    # Hoisted input projection fused with batch-first -> time-major layout:
    # (Bp, T, I) x (2, I, 4H) -> (2, T, Bp, 4H), bf16 MXU / f32 accumulate.
    xw = jnp.einsum("bti,dif->dtbf", x_p.astype(jnp.bfloat16), w_ih,
                    preferred_element_type=jnp.float32) + b[:, None, None, :]

    kernel = functools.partial(_blstm_kernel, hidden_size=H, chunk=CH)
    out = pl.pallas_call(
        kernel,
        grid=(nc,),
        out_shape=jax.ShapeDtypeStruct((T, Bp, 2 * H), jnp.float32),
        in_specs=[
            # forward projection: direction 0, time chunks in forward order
            pl.BlockSpec((None, CH, Bp, 4 * H), lambda tc: (0, tc, 0, 0)),
            # backward projection: direction 1, time chunks read in REVERSE
            pl.BlockSpec((None, CH, Bp, 4 * H),
                         lambda tc: (1, nc - 1 - tc, 0, 0)),
            # recurrent weights, both directions, grid-invariant block
            pl.BlockSpec((2, H, 4 * H), lambda tc: (0, 0, 0)),
        ],
        out_specs=pl.BlockSpec((CH, Bp, 2 * H), lambda tc: (tc, 0, 0)),
        scratch_shapes=[pltpu.VMEM((2, Bp, H), jnp.float32),   # h (fwd, bwd)
                        pltpu.VMEM((2, Bp, H), jnp.float32)],  # c (fwd, bwd)
        compiler_params=pltpu.CompilerParams(
            # time chunks are sequential (carries live in scratch)
            dimension_semantics=("arbitrary",),
        ),
    )(xw, xw, w_hh)

    # out[t, :, :H] = fwd h(t);  out[t, :, H:] = bwd h(T-1-t).
    # Single fused slab add + un-reverse + back to batch-first, drop padding.
    out_tm = out[:, :, :H] + out[::-1, :, H:]
    return jnp.transpose(out_tm, (1, 0, 2))[:B]


def init_blstm_params(key, input_size, hidden_size):
    """PyTorch-shaped LSTM params, pre-transposed / bias pre-summed.

    PyTorch stores per direction: W_ih (4H, I), W_hh (4H, H), b_ih (4H,),
    b_hh (4H,), each U(-1/sqrt(H), 1/sqrt(H)).  We stack directions, transpose
    weights to (I, 4H)/(H, 4H) and pre-sum the two biases.  Gate order stays
    PyTorch's [i, f, g, o]; the wrapper reorders columns for the kernel.
    """
    k = 1.0 / jnp.sqrt(hidden_size)
    keys = jax.random.split(key, 8)

    def u(kk, shape):
        return jax.random.uniform(kk, shape, jnp.float32, -k, k)

    w_ih = jnp.stack([u(keys[0], (4 * hidden_size, input_size)).T,
                      u(keys[4], (4 * hidden_size, input_size)).T])   # (2, I, 4H)
    w_hh = jnp.stack([u(keys[1], (4 * hidden_size, hidden_size)).T,
                      u(keys[5], (4 * hidden_size, hidden_size)).T])  # (2, H, 4H)
    b = jnp.stack([u(keys[2], (4 * hidden_size,)) + u(keys[3], (4 * hidden_size,)),
                   u(keys[6], (4 * hidden_size,)) + u(keys[7], (4 * hidden_size,))])  # (2, 4H)
    return {"w_ih": w_ih, "w_hh": w_hh, "b": b}


def blstm_reference(x, params):
    """Pure-JAX reference (lax.scan) with the same bf16-matmul numerics."""
    H = params["w_hh"].shape[1]

    def direction(x_tm, wih, whh, b):
        xw = jnp.einsum("tbi,if->tbf",
                        x_tm.astype(jnp.bfloat16), wih.astype(jnp.bfloat16),
                        preferred_element_type=jnp.float32) + b

        def step(carry, xw_t):
            h, c = carry
            gates = xw_t + jnp.dot(h.astype(jnp.bfloat16),
                                   whh.astype(jnp.bfloat16),
                                   preferred_element_type=jnp.float32)
            i_g = jax.nn.sigmoid(gates[:, 0 * H:1 * H])
            f_g = jax.nn.sigmoid(gates[:, 1 * H:2 * H])
            g_g = jnp.tanh(gates[:, 2 * H:3 * H])
            o_g = jax.nn.sigmoid(gates[:, 3 * H:4 * H])
            c = f_g * c + i_g * g_g
            h = o_g * jnp.tanh(c)
            return (h, c), h

        B = x_tm.shape[1]
        init = (jnp.zeros((B, H), jnp.float32), jnp.zeros((B, H), jnp.float32))
        _, hs = lax.scan(step, init, xw)
        return hs  # (T, B, H)

    x_tm = jnp.transpose(x, (1, 0, 2))
    h_f = direction(x_tm, params["w_ih"][0], params["w_hh"][0], params["b"][0])
    h_b = direction(x_tm[::-1], params["w_ih"][1], params["w_hh"][1],
                    params["b"][1])[::-1]
    return jnp.transpose(h_f + h_b, (1, 0, 2))


if __name__ == "__main__":
    fwd = jax.jit(blstm_forward)

    # Primary small test (batch=2, seq=8, input=16, hidden=32): single chunk.
    key = jax.random.PRNGKey(0)
    k_x, k_p, k_x2 = jax.random.split(key, 3)
    B, T, I, H = 2, 8, 16, 32
    x = jax.random.normal(k_x, (B, T, I), jnp.float32)
    params = init_blstm_params(k_p, I, H)
    out = jax.block_until_ready(fwd(x, params))
    ref = blstm_reference(x, params)
    assert out.shape == (B, T, H)
    assert jnp.allclose(out, ref, atol=1e-3, rtol=1e-3), "mismatch vs reference"

    # Multi-chunk test (odd batch -> padding, T=24 -> 2 time chunks) exercises
    # carry persistence across grid steps and reversed backward chunk reads.
    B2, T2 = 3, 24
    x2 = jax.random.normal(k_x2, (B2, T2, I), jnp.float32)
    out2 = jax.block_until_ready(fwd(x2, params))
    ref2 = blstm_reference(x2, params)
    assert out2.shape == (B2, T2, H)
    assert jnp.allclose(out2, ref2, atol=1e-3, rtol=1e-3), "mismatch vs reference (chunked)"

    print("KERNEL_OK")
</pallas_src>

<mosaic_0001>
module attributes {stable_mosaic.version = 11 : i64} {
  func.func @_blstm_kernel(%arg0: i32, %arg1: memref<1x8x8x128xf32, #tpu.memory_space<vmem>>, %arg2: memref<1x8x8x128xf32, #tpu.memory_space<vmem>>, %arg3: memref<2x32x128xbf16, #tpu.memory_space<vmem>>, %arg4: memref<8x8x64xf32, #tpu.memory_space<vmem>>, %arg5: memref<2x8x32xf32, #tpu.memory_space<vmem>>, %arg6: memref<2x8x32xf32, #tpu.memory_space<vmem>>) attributes {dimension_semantics = [#tpu.dimension_semantics<arbitrary>], iteration_bounds = array<i64: 1>, scalar_prefetch = 0 : i64, scratch_operands = 2 : i64, tpu.core_type = #tpu.core_type<tc>, window_params = [{transform_indices = @transform_0, window_bounds = array<i64: 1, 8, 8, 128>}, {transform_indices = @transform_1, window_bounds = array<i64: 1, 8, 8, 128>}, {pipeline_mode = #tpu.pipeline_mode<synchronous>, transform_indices = @transform_2, window_bounds = array<i64: 2, 32, 128>}, {transform_indices = @transform_3, window_bounds = array<i64: 8, 8, 64>}]} {
    %c0_i32 = arith.constant 0 : i32
    %0 = arith.cmpi eq, %arg0, %c0_i32 : i32
    %1 = arith.extui %0 : i1 to i32
    %c0_i32_0 = arith.constant 0 : i32
    %2 = arith.cmpi ne, %1, %c0_i32_0 : i32
    scf.if %2 {
      %cst_133 = arith.constant 0.000000e+00 : f32
      %427 = vector.broadcast %cst_133 : f32 to vector<2x8x32xf32>
      %c0_134 = arith.constant 0 : index
      %c0_135 = arith.constant 0 : index
      %c0_136 = arith.constant 0 : index
      %428 = vector.load %arg5[%c0_134, %c0_135, %c0_136] : memref<2x8x32xf32, #tpu.memory_space<vmem>>, vector<2x8x32xf32>
      tpu.vector_store %arg5[%c0_134, %c0_135, %c0_136], %427 {strides = array<i32>} : memref<2x8x32xf32, #tpu.memory_space<vmem>>, vector<2x8x32xf32>,
      %cst_137 = arith.constant 0.000000e+00 : f32
      %429 = vector.broadcast %cst_137 : f32 to vector<2x8x32xf32>
      %c0_138 = arith.constant 0 : index
      %c0_139 = arith.constant 0 : index
      %c0_140 = arith.constant 0 : index
      %430 = vector.load %arg6[%c0_138, %c0_139, %c0_140] : memref<2x8x32xf32, #tpu.memory_space<vmem>>, vector<2x8x32xf32>
      tpu.vector_store %arg6[%c0_138, %c0_139, %c0_140], %429 {strides = array<i32>} : memref<2x8x32xf32, #tpu.memory_space<vmem>>, vector<2x8x32xf32>,
    } else {
    }
    %c0 = arith.constant 0 : index
    %c0_1 = arith.constant 0 : index
    %c0_2 = arith.constant 0 : index
    %3 = vector.load %arg3[%c0, %c0_1, %c0_2] : memref<2x32x128xbf16, #tpu.memory_space<vmem>>, vector<1x32x128xbf16>
    %4 = vector.shape_cast %3 : vector<1x32x128xbf16> to vector<32x128xbf16>
    %c1 = arith.constant 1 : index
    %c0_3 = arith.constant 0 : index
    %c0_4 = arith.constant 0 : index
    %5 = vector.load %arg3[%c1, %c0_3, %c0_4] : memref<2x32x128xbf16, #tpu.memory_space<vmem>>, vector<1x32x128xbf16>
    %6 = vector.shape_cast %5 : vector<1x32x128xbf16> to vector<32x128xbf16>
    %c0_5 = arith.constant 0 : index
    %c0_6 = arith.constant 0 : index
    %c0_7 = arith.constant 0 : index
    %7 = vector.load %arg5[%c0_5, %c0_6, %c0_7] : memref<2x8x32xf32, #tpu.memory_space<vmem>>, vector<1x8x32xf32>
    %8 = vector.shape_cast %7 : vector<1x8x32xf32> to vector<8x32xf32>
    %c0_8 = arith.constant 0 : index
    %c0_9 = arith.constant 0 : index
    %c0_10 = arith.constant 0 : index
    %9 = vector.load %arg6[%c0_8, %c0_9, %c0_10] : memref<2x8x32xf32, #tpu.memory_space<vmem>>, vector<1x8x32xf32>
    %10 = vector.shape_cast %9 : vector<1x8x32xf32> to vector<8x32xf32>
    %c1_11 = arith.constant 1 : index
    %c0_12 = arith.constant 0 : index
    %c0_13 = arith.constant 0 : index
    %11 = vector.load %arg5[%c1_11, %c0_12, %c0_13] : memref<2x8x32xf32, #tpu.memory_space<vmem>>, vector<1x8x32xf32>
    %12 = vector.shape_cast %11 : vector<1x8x32xf32> to vector<8x32xf32>
    %c1_14 = arith.constant 1 : index
    %c0_15 = arith.constant 0 : index
    %c0_16 = arith.constant 0 : index
    %13 = vector.load %arg6[%c1_14, %c0_15, %c0_16] : memref<2x8x32xf32, #tpu.memory_space<vmem>>, vector<1x8x32xf32>
    %14 = vector.shape_cast %13 : vector<1x8x32xf32> to vector<8x32xf32>
    %c0_i32_17 = arith.constant 0 : i32
    %c0_18 = arith.constant 0 : index
    %15 = arith.index_cast %c0_i32_17 : i32 to index
    %c0_19 = arith.constant 0 : index
    %c0_20 = arith.constant 0 : index
    %16 = vector.load %arg1[%c0_18, %15, %c0_19, %c0_20] : memref<1x8x8x128xf32, #tpu.memory_space<vmem>>, vector<1x1x8x128xf32>
    %17 = vector.shape_cast %16 : vector<1x1x8x128xf32> to vector<8x128xf32>
    %18 = arith.truncf %8 : vector<8x32xf32> to vector<8x32xbf16>
    %cst = arith.constant dense<0.000000e+00> : vector<8x128xf32>
    %19 = tpu.matmul %18, %4, %cst {dimension_numbers = #tpu.dot_dimension_numbers<[1], [0], [0], [1], [0, 0, 1, 1], [], []>} : vector<8x32xbf16>, vector<32x128xbf16>, vector<8x128xf32> -> vector<8x128xf32>
    %20 = arith.addf %17, %19 : vector<8x128xf32>
    %21 = vector.extract_strided_slice %20 {offsets = [0, 0], sizes = [8, 96], strides = [1, 1]} : vector<8x128xf32> to vector<8x96xf32>
    %22 = arith.negf %21 : vector<8x96xf32>
    %23 = math.exp %22 : vector<8x96xf32>
    %cst_21 = arith.constant 1.000000e+00 : f32
    %24 = vector.broadcast %cst_21 : f32 to vector<8x96xf32>
    %25 = arith.addf %24, %23 : vector<8x96xf32>
    %26 = arith.divf %24, %25 : vector<8x96xf32>
    %27 = vector.extract_strided_slice %20 {offsets = [0, 96], sizes = [8, 32], strides = [1, 1]} : vector<8x128xf32> to vector<8x32xf32>
    %28 = math.tanh %27 : vector<8x32xf32>
    %29 = vector.extract_strided_slice %26 {offsets = [0, 0], sizes = [8, 32], strides = [1, 1]} : vector<8x96xf32> to vector<8x32xf32>
    %30 = vector.extract_strided_slice %26 {offsets = [0, 32], sizes = [8, 32], strides = [1, 1]} : vector<8x96xf32> to vector<8x32xf32>
    %31 = vector.extract_strided_slice %26 {offsets = [0, 64], sizes = [8, 32], strides = [1, 1]} : vector<8x96xf32> to vector<8x32xf32>
    %32 = arith.mulf %30, %10 : vector<8x32xf32>
    %33 = arith.mulf %29, %28 : vector<8x32xf32>
    %34 = arith.addf %32, %33 : vector<8x32xf32>
    %35 = math.tanh %34 : vector<8x32xf32>
    %36 = arith.mulf %31, %35 : vector<8x32xf32>
    %c7_i32 = arith.constant 7 : i32
    %37 = arith.subi %c7_i32, %c0_i32_17 : i32
    %c0_22 = arith.constant 0 : index
    %38 = arith.index_cast %37 : i32 to index
    %c0_23 = arith.constant 0 : index
    %c0_24 = arith.constant 0 : index
    %39 = vector.load %arg2[%c0_22, %38, %c0_23, %c0_24] : memref<1x8x8x128xf32, #tpu.memory_space<vmem>>, vector<1x1x8x128xf32>
    %40 = vector.shape_cast %39 : vector<1x1x8x128xf32> to vector<8x128xf32>
    %41 = arith.truncf %12 : vector<8x32xf32> to vector<8x32xbf16>
    %cst_25 = arith.constant dense<0.000000e+00> : vector<8x128xf32>
    %42 = tpu.matmul %41, %6, %cst_25 {dimension_numbers = #tpu.dot_dimension_numbers<[1], [0], [0], [1], [0, 0, 1, 1], [], []>} : vector<8x32xbf16>, vector<32x128xbf16>, vector<8x128xf32> -> vector<8x128xf32>
    %43 = arith.addf %40, %42 : vector<8x128xf32>
    %44 = vector.extract_strided_slice %43 {offsets = [0, 0], sizes = [8, 96], strides = [1, 1]} : vector<8x128xf32> to vector<8x96xf32>
    %45 = arith.negf %44 : vector<8x96xf32>
    %46 = math.exp %45 : vector<8x96xf32>
    %cst_26 = arith.constant 1.000000e+00 : f32
    %47 = vector.broadcast %cst_26 : f32 to vector<8x96xf32>
    %48 = arith.addf %47, %46 : vector<8x96xf32>
    %49 = arith.divf %47, %48 : vector<8x96xf32>
    %50 = vector.extract_strided_slice %43 {offsets = [0, 96], sizes = [8, 32], strides = [1, 1]} : vector<8x128xf32> to vector<8x32xf32>
    %51 = math.tanh %50 : vector<8x32xf32>
    %52 = vector.extract_strided_slice %49 {offsets = [0, 0], sizes = [8, 32], strides = [1, 1]} : vector<8x96xf32> to vector<8x32xf32>
    %53 = vector.extract_strided_slice %49 {offsets = [0, 32], sizes = [8, 32], strides = [1, 1]} : vector<8x96xf32> to vector<8x32xf32>
    %54 = vector.extract_strided_slice %49 {offsets = [0, 64], sizes = [8, 32], strides = [1, 1]} : vector<8x96xf32> to vector<8x32xf32>
    %55 = arith.mulf %53, %14 : vector<8x32xf32>
    %56 = arith.mulf %52, %51 : vector<8x32xf32>
    %57 = arith.addf %55, %56 : vector<8x32xf32>
    %58 = math.tanh %57 : vector<8x32xf32>
    %59 = arith.mulf %54, %58 : vector<8x32xf32>
    %60 = tpu.concatenate %36, %59 in 1 : vector<8x32xf32>, vector<8x32xf32> -> vector<8x64xf32>
    %61 = arith.index_cast %c0_i32_17 : i32 to index
    %c0_27 = arith.constant 0 : index
    %c0_28 = arith.constant 0 : index
    %62 = vector.load %arg4[%61, %c0_27, %c0_28] : memref<8x8x64xf32, #tpu.memory_space<vmem>>, vector<1x8x64xf32>
    %63 = vector.shape_cast %62 : vector<1x8x64xf32> to vector<8x64xf32>
    %64 = vector.shape_cast %60 : vector<8x64xf32> to vector<1x8x64xf32>
    tpu.vector_store %arg4[%61, %c0_27, %c0_28], %64 {strides = array<i32>} : memref<8x8x64xf32, #tpu.memory_space<vmem>>, vector<1x8x64xf32>,
    %c1_i32 = arith.constant 1 : i32
    %c0_29 = arith.constant 0 : index
    %65 = arith.index_cast %c1_i32 : i32 to index
    %c0_30 = arith.constant 0 : index
    %c0_31 = arith.constant 0 : index
    %66 = vector.load %arg1[%c0_29, %65, %c0_30, %c0_31] : memref<1x8x8x128xf32, #tpu.memory_space<vmem>>, vector<1x1x8x128xf32>
    %67 = vector.shape_cast %66 : vector<1x1x8x128xf32> to vector<8x128xf32>
    %68 = arith.truncf %36 : vector<8x32xf32> to vector<8x32xbf16>
    %cst_32 = arith.constant dense<0.000000e+00> : vector<8x128xf32>
    %69 = tpu.matmul %68, %4, %cst_32 {dimension_numbers = #tpu.dot_dimension_numbers<[1], [0], [0], [1], [0, 0, 1, 1], [], []>} : vector<8x32xbf16>, vector<32x128xbf16>, vector<8x128xf32> -> vector<8x128xf32>
    %70 = arith.addf %67, %69 : vector<8x128xf32>
    %71 = vector.extract_strided_slice %70 {offsets = [0, 0], sizes = [8, 96], strides = [1, 1]} : vector<8x128xf32> to vector<8x96xf32>
    %72 = arith.negf %71 : vector<8x96xf32>
    %73 = math.exp %72 : vector<8x96xf32>
    %cst_33 = arith.constant 1.000000e+00 : f32
    %74 = vector.broadcast %cst_33 : f32 to vector<8x96xf32>
    %75 = arith.addf %74, %73 : vector<8x96xf32>
    %76 = arith.divf %74, %75 : vector<8x96xf32>
    %77 = vector.extract_strided_slice %70 {offsets = [0, 96], sizes = [8, 32], strides = [1, 1]} : vector<8x128xf32> to vector<8x32xf32>
    %78 = math.tanh %77 : vector<8x32xf32>
    %79 = vector.extract_strided_slice %76 {offsets = [0, 0], sizes = [8, 32], strides = [1, 1]} : vector<8x96xf32> to vector<8x32xf32>
    %80 = vector.extract_strided_slice %76 {offsets = [0, 32], sizes = [8, 32], strides = [1, 1]} : vector<8x96xf32> to vector<8x32xf32>
    %81 = vector.extract_strided_slice %76 {offsets = [0, 64], sizes = [8, 32], strides = [1, 1]} : vector<8x96xf32> to vector<8x32xf32>
    %82 = arith.mulf %80, %34 : vector<8x32xf32>
    %83 = arith.mulf %79, %78 : vector<8x32xf32>
    %84 = arith.addf %82, %83 : vector<8x32xf32>
    %85 = math.tanh %84 : vector<8x32xf32>
    %86 = arith.mulf %81, %85 : vector<8x32xf32>
    %c7_i32_34 = arith.constant 7 : i32
    %87 = arith.subi %c7_i32_34, %c1_i32 : i32
    %c0_35 = arith.constant 0 : index
    %88 = arith.index_cast %87 : i32 to index
    %c0_36 = arith.constant 0 : index
    %c0_37 = arith.constant 0 : index
    %89 = vector.load %arg2[%c0_35, %88, %c0_36, %c0_37] : memref<1x8x8x128xf32, #tpu.memory_space<vmem>>, vector<1x1x8x128xf32>
    %90 = vector.shape_cast %89 : vector<1x1x8x128xf32> to vector<8x128xf32>
    %91 = arith.truncf %59 : vector<8x32xf32> to vector<8x32xbf16>
    %cst_38 = arith.constant dense<0.000000e+00> : vector<8x128xf32>
    %92 = tpu.matmul %91, %6, %cst_38 {dimension_numbers = #tpu.dot_dimension_numbers<[1], [0], [0], [1], [0, 0, 1, 1], [], []>} : vector<8x32xbf16>, vector<32x128xbf16>, vector<8x128xf32> -> vector<8x128xf32>
    %93 = arith.addf %90, %92 : vector<8x128xf32>
    %94 = vector.extract_strided_slice %93 {offsets = [0, 0], sizes = [8, 96], strides = [1, 1]} : vector<8x128xf32> to vector<8x96xf32>
    %95 = arith.negf %94 : vector<8x96xf32>
    %96 = math.exp %95 : vector<8x96xf32>
    %cst_39 = arith.constant 1.000000e+00 : f32
    %97 = vector.broadcast %cst_39 : f32 to vector<8x96xf32>
    %98 = arith.addf %97, %96 : vector<8x96xf32>
    %99 = arith.divf %97, %98 : vector<8x96xf32>
    %100 = vector.extract_strided_slice %93 {offsets = [0, 96], sizes = [8, 32], strides = [1, 1]} : vector<8x128xf32> to vector<8x32xf32>
    %101 = math.tanh %100 : vector<8x32xf32>
    %102 = vector.extract_strided_slice %99 {offsets = [0, 0], sizes = [8, 32], strides = [1, 1]} : vector<8x96xf32> to vector<8x32xf32>
    %103 = vector.extract_strided_slice %99 {offsets = [0, 32], sizes = [8, 32], strides = [1, 1]} : vector<8x96xf32> to vector<8x32xf32>
    %104 = vector.extract_strided_slice %99 {offsets = [0, 64], sizes = [8, 32], strides = [1, 1]} : vector<8x96xf32> to vector<8x32xf32>
    %105 = arith.mulf %103, %57 : vector<8x32xf32>
    %106 = arith.mulf %102, %101 : vector<8x32xf32>
    %107 = arith.addf %105, %106 : vector<8x32xf32>
    %108 = math.tanh %107 : vector<8x32xf32>
    %109 = arith.mulf %104, %108 : vector<8x32xf32>
    %110 = tpu.concatenate %86, %109 in 1 : vector<8x32xf32>, vector<8x32xf32> -> vector<8x64xf32>
    %111 = arith.index_cast %c1_i32 : i32 to index
    %c0_40 = arith.constant 0 : index
    %c0_41 = arith.constant 0 : index
    %112 = vector.load %arg4[%111, %c0_40, %c0_41] : memref<8x8x64xf32, #tpu.memory_space<vmem>>, vector<1x8x64xf32>
    %113 = vector.shape_cast %112 : vector<1x8x64xf32> to vector<8x64xf32>
    %114 = vector.shape_cast %110 : vector<8x64xf32> to vector<1x8x64xf32>
    tpu.vector_store %arg4[%111, %c0_40, %c0_41], %114 {strides = array<i32>} : memref<8x8x64xf32, #tpu.memory_space<vmem>>, vector<1x8x64xf32>,
    %c2_i32 = arith.constant 2 : i32
    %c0_42 = arith.constant 0 : index
    %115 = arith.index_cast %c2_i32 : i32 to index
    %c0_43 = arith.constant 0 : index
    %c0_44 = arith.constant 0 : index
    %116 = vector.load %arg1[%c0_42, %115, %c0_43, %c0_44] : memref<1x8x8x128xf32, #tpu.memory_space<vmem>>, vector<1x1x8x128xf32>
    %117 = vector.shape_cast %116 : vector<1x1x8x128xf32> to vector<8x128xf32>
    %118 = arith.truncf %86 : vector<8x32xf32> to vector<8x32xbf16>
    %cst_45 = arith.constant dense<0.000000e+00> : vector<8x128xf32>
    %119 = tpu.matmul %118, %4, %cst_45 {dimension_numbers = #tpu.dot_dimension_numbers<[1], [0], [0], [1], [0, 0, 1, 1], [], []>} : vector<8x32xbf16>, vector<32x128xbf16>, vector<8x128xf32> -> vector<8x128xf32>
    %120 = arith.addf %117, %119 : vector<8x128xf32>
    %121 = vector.extract_strided_slice %120 {offsets = [0, 0], sizes = [8, 96], strides = [1, 1]} : vector<8x128xf32> to vector<8x96xf32>
    %122 = arith.negf %121 : vector<8x96xf32>
    %123 = math.exp %122 : vector<8x96xf32>
    %cst_46 = arith.constant 1.000000e+00 : f32
    %124 = vector.broadcast %cst_46 : f32 to vector<8x96xf32>
    %125 = arith.addf %124, %123 : vector<8x96xf32>
    %126 = arith.divf %124, %125 : vector<8x96xf32>
    %127 = vector.extract_strided_slice %120 {offsets = [0, 96], sizes = [8, 32], strides = [1, 1]} : vector<8x128xf32> to vector<8x32xf32>
    %128 = math.tanh %127 : vector<8x32xf32>
    %129 = vector.extract_strided_slice %126 {offsets = [0, 0], sizes = [8, 32], strides = [1, 1]} : vector<8x96xf32> to vector<8x32xf32>
    %130 = vector.extract_strided_slice %126 {offsets = [0, 32], sizes = [8, 32], strides = [1, 1]} : vector<8x96xf32> to vector<8x32xf32>
    %131 = vector.extract_strided_slice %126 {offsets = [0, 64], sizes = [8, 32], strides = [1, 1]} : vector<8x96xf32> to vector<8x32xf32>
    %132 = arith.mulf %130, %84 : vector<8x32xf32>
    %133 = arith.mulf %129, %128 : vector<8x32xf32>
    %134 = arith.addf %132, %133 : vector<8x32xf32>
    %135 = math.tanh %134 : vector<8x32xf32>
    %136 = arith.mulf %131, %135 : vector<8x32xf32>
    %c7_i32_47 = arith.constant 7 : i32
    %137 = arith.subi %c7_i32_47, %c2_i32 : i32
    %c0_48 = arith.constant 0 : index
    %138 = arith.index_cast %137 : i32 to index
    %c0_49 = arith.constant 0 : index
    %c0_50 = arith.constant 0 : index
    %139 = vector.load %arg2[%c0_48, %138, %c0_49, %c0_50] : memref<1x8x8x128xf32, #tpu.memory_space<vmem>>, vector<1x1x8x128xf32>
    %140 = vector.shape_cast %139 : vector<1x1x8x128xf32> to vector<8x128xf32>
    %141 = arith.truncf %109 : vector<8x32xf32> to vector<8x32xbf16>
    %cst_51 = arith.constant dense<0.000000e+00> : vector<8x128xf32>
    %142 = tpu.matmul %141, %6, %cst_51 {dimension_numbers = #tpu.dot_dimension_numbers<[1], [0], [0], [1], [0, 0, 1, 1], [], []>} : vector<8x32xbf16>, vector<32x128xbf16>, vector<8x128xf32> -> vector<8x128xf32>
    %143 = arith.addf %140, %142 : vector<8x128xf32>
    %144 = vector.extract_strided_slice %143 {offsets = [0, 0], sizes = [8, 96], strides = [1, 1]} : vector<8x128xf32> to vector<8x96xf32>
    %145 = arith.negf %144 : vector<8x96xf32>
    %146 = math.exp %145 : vector<8x96xf32>
    %cst_52 = arith.constant 1.000000e+00 : f32
    %147 = vector.broadcast %cst_52 : f32 to vector<8x96xf32>
    %148 = arith.addf %147, %146 : vector<8x96xf32>
    %149 = arith.divf %147, %148 : vector<8x96xf32>
    %150 = vector.extract_strided_slice %143 {offsets = [0, 96], sizes = [8, 32], strides = [1, 1]} : vector<8x128xf32> to vector<8x32xf32>
    %151 = math.tanh %150 : vector<8x32xf32>
    %152 = vector.extract_strided_slice %149 {offsets = [0, 0], sizes = [8, 32], strides = [1, 1]} : vector<8x96xf32> to vector<8x32xf32>
    %153 = vector.extract_strided_slice %149 {offsets = [0, 32], sizes = [8, 32], strides = [1, 1]} : vector<8x96xf32> to vector<8x32xf32>
    %154 = vector.extract_strided_slice %149 {offsets = [0, 64], sizes = [8, 32], strides = [1, 1]} : vector<8x96xf32> to vector<8x32xf32>
    %155 = arith.mulf %153, %107 : vector<8x32xf32>
    %156 = arith.mulf %152, %151 : vector<8x32xf32>
    %157 = arith.addf %155, %156 : vector<8x32xf32>
    %158 = math.tanh %157 : vector<8x32xf32>
    %159 = arith.mulf %154, %158 : vector<8x32xf32>
    %160 = tpu.concatenate %136, %159 in 1 : vector<8x32xf32>, vector<8x32xf32> -> vector<8x64xf32>
    %161 = arith.index_cast %c2_i32 : i32 to index
    %c0_53 = arith.constant 0 : index
    %c0_54 = arith.constant 0 : index
    %162 = vector.load %arg4[%161, %c0_53, %c0_54] : memref<8x8x64xf32, #tpu.memory_space<vmem>>, vector<1x8x64xf32>
    %163 = vector.shape_cast %162 : vector<1x8x64xf32> to vector<8x64xf32>
    %164 = vector.shape_cast %160 : vector<8x64xf32> to vector<1x8x64xf32>
    tpu.vector_store %arg4[%161, %c0_53, %c0_54], %164 {strides = array<i32>} : memref<8x8x64xf32, #tpu.memory_space<vmem>>, vector<1x8x64xf32>,
    %c3_i32 = arith.constant 3 : i32
    %c0_55 = arith.constant 0 : index
    %165 = arith.index_cast %c3_i32 : i32 to index
    %c0_56 = arith.constant 0 : index
    %c0_57 = arith.constant 0 : index
    %166 = vector.load %arg1[%c0_55, %165, %c0_56, %c0_57] : memref<1x8x8x128xf32, #tpu.memory_space<vmem>>, vector<1x1x8x128xf32>
    %167 = vector.shape_cast %166 : vector<1x1x8x128xf32> to vector<8x128xf32>
    %168 = arith.truncf %136 : vector<8x32xf32> to vector<8x32xbf16>
    %cst_58 = arith.constant dense<0.000000e+00> : vector<8x128xf32>
    %169 = tpu.matmul %168, %4, %cst_58 {dimension_numbers = #tpu.dot_dimension_numbers<[1], [0], [0], [1], [0, 0, 1, 1], [], []>} : vector<8x32xbf16>, vector<32x128xbf16>, vector<8x128xf32> -> vector<8x128xf32>
    %170 = arith.addf %167, %169 : vector<8x128xf32>
    %171 = vector.extract_strided_slice %170 {offsets = [0, 0], sizes = [8, 96], strides = [1, 1]} : vector<8x128xf32> to vector<8x96xf32>
    %172 = arith.negf %171 : vector<8x96xf32>
    %173 = math.exp %172 : vector<8x96xf32>
    %cst_59 = arith.constant 1.000000e+00 : f32
    %174 = vector.broadcast %cst_59 : f32 to vector<8x96xf32>
    %175 = arith.addf %174, %173 : vector<8x96xf32>
    %176 = arith.divf %174, %175 : vector<8x96xf32>
    %177 = vector.extract_strided_slice %170 {offsets = [0, 96], sizes = [8, 32], strides = [1, 1]} : vector<8x128xf32> to vector<8x32xf32>
    %178 = math.tanh %177 : vector<8x32xf32>
    %179 = vector.extract_strided_slice %176 {offsets = [0, 0], sizes = [8, 32], strides = [1, 1]} : vector<8x96xf32> to vector<8x32xf32>
    %180 = vector.extract_strided_slice %176 {offsets = [0, 32], sizes = [8, 32], strides = [1, 1]} : vector<8x96xf32> to vector<8x32xf32>
    %181 = vector.extract_strided_slice %176 {offsets = [0, 64], sizes = [8, 32], strides = [1, 1]} : vector<8x96xf32> to vector<8x32xf32>
    %182 = arith.mulf %180, %134 : vector<8x32xf32>
    %183 = arith.mulf %179, %178 : vector<8x32xf32>
    %184 = arith.addf %182, %183 : vector<8x32xf32>
    %185 = math.tanh %184 : vector<8x32xf32>
    %186 = arith.mulf %181, %185 : vector<8x32xf32>
    %c7_i32_60 = arith.constant 7 : i32
    %187 = arith.subi %c7_i32_60, %c3_i32 : i32
    %c0_61 = arith.constant 0 : index
    %188 = arith.index_cast %187 : i32 to index
    %c0_62 = arith.constant 0 : index
    %c0_63 = arith.constant 0 : index
    %189 = vector.load %arg2[%c0_61, %188, %c0_62, %c0_63] : memref<1x8x8x128xf32, #tpu.memory_space<vmem>>, vector<1x1x8x128xf32>
    %190 = vector.shape_cast %189 : vector<1x1x8x128xf32> to vector<8x128xf32>
    %191 = arith.truncf %159 : vector<8x32xf32> to vector<8x32xbf16>
    %cst_64 = arith.constant dense<0.000000e+00> : vector<8x128xf32>
    %192 = tpu.matmul %191, %6, %cst_64 {dimension_numbers = #tpu.dot_dimension_numbers<[1], [0], [0], [1], [0, 0, 1, 1], [], []>} : vector<8x32xbf16>, vector<32x128xbf16>, vector<8x128xf32> -> vector<8x128xf32>
    %193 = arith.addf %190, %192 : vector<8x128xf32>
    %194 = vector.extract_strided_slice %193 {offsets = [0, 0], sizes = [8, 96], strides = [1, 1]} : vector<8x128xf32> to vector<8x96xf32>
    %195 = arith.negf %194 : vector<8x96xf32>
    %196 = math.exp %195 : vector<8x96xf32>
    %cst_65 = arith.constant 1.000000e+00 : f32
    %197 = vector.broadcast %cst_65 : f32 to vector<8x96xf32>
    %198 = arith.addf %197, %196 : vector<8x96xf32>
    %199 = arith.divf %197, %198 : vector<8x96xf32>
    %200 = vector.extract_strided_slice %193 {offsets = [0, 96], sizes = [8, 32], strides = [1, 1]} : vector<8x128xf32> to vector<8x32xf32>
    %201 = math.tanh %200 : vector<8x32xf32>
    %202 = vector.extract_strided_slice %199 {offsets = [0, 0], sizes = [8, 32], strides = [1, 1]} : vector<8x96xf32> to vector<8x32xf32>
    %203 = vector.extract_strided_slice %199 {offsets = [0, 32], sizes = [8, 32], strides = [1, 1]} : vector<8x96xf32> to vector<8x32xf32>
    %204 = vector.extract_strided_slice %199 {offsets = [0, 64], sizes = [8, 32], strides = [1, 1]} : vector<8x96xf32> to vector<8x32xf32>
    %205 = arith.mulf %203, %157 : vector<8x32xf32>
    %206 = arith.mulf %202, %201 : vector<8x32xf32>
    %207 = arith.addf %205, %206 : vector<8x32xf32>
    %208 = math.tanh %207 : vector<8x32xf32>
    %209 = arith.mulf %204, %208 : vector<8x32xf32>
    %210 = tpu.concatenate %186, %209 in 1 : vector<8x32xf32>, vector<8x32xf32> -> vector<8x64xf32>
    %211 = arith.index_cast %c3_i32 : i32 to index
    %c0_66 = arith.constant 0 : index
    %c0_67 = arith.constant 0 : index
    %212 = vector.load %arg4[%211, %c0_66, %c0_67] : memref<8x8x64xf32, #tpu.memory_space<vmem>>, vector<1x8x64xf32>
    %213 = vector.shape_cast %212 : vector<1x8x64xf32> to vector<8x64xf32>
    %214 = vector.shape_cast %210 : vector<8x64xf32> to vector<1x8x64xf32>
    tpu.vector_store %arg4[%211, %c0_66, %c0_67], %214 {strides = array<i32>} : memref<8x8x64xf32, #tpu.memory_space<vmem>>, vector<1x8x64xf32>,
    %c4_i32 = arith.constant 4 : i32
    %c0_68 = arith.constant 0 : index
    %215 = arith.index_cast %c4_i32 : i32 to index
    %c0_69 = arith.constant 0 : index
    %c0_70 = arith.constant 0 : index
    %216 = vector.load %arg1[%c0_68, %215, %c0_69, %c0_70] : memref<1x8x8x128xf32, #tpu.memory_space<vmem>>, vector<1x1x8x128xf32>
    %217 = vector.shape_cast %216 : vector<1x1x8x128xf32> to vector<8x128xf32>
    %218 = arith.truncf %186 : vector<8x32xf32> to vector<8x32xbf16>
    %cst_71 = arith.constant dense<0.000000e+00> : vector<8x128xf32>
    %219 = tpu.matmul %218, %4, %cst_71 {dimension_numbers = #tpu.dot_dimension_numbers<[1], [0], [0], [1], [0, 0, 1, 1], [], []>} : vector<8x32xbf16>, vector<32x128xbf16>, vector<8x128xf32> -> vector<8x128xf32>
    %220 = arith.addf %217, %219 : vector<8x128xf32>
    %221 = vector.extract_strided_slice %220 {offsets = [0, 0], sizes = [8, 96], strides = [1, 1]} : vector<8x128xf32> to vector<8x96xf32>
    %222 = arith.negf %221 : vector<8x96xf32>
    %223 = math.exp %222 : vector<8x96xf32>
    %cst_72 = arith.constant 1.000000e+00 : f32
    %224 = vector.broadcast %cst_72 : f32 to vector<8x96xf32>
    %225 = arith.addf %224, %223 : vector<8x96xf32>
    %226 = arith.divf %224, %225 : vector<8x96xf32>
    %227 = vector.extract_strided_slice %220 {offsets = [0, 96], sizes = [8, 32], strides = [1, 1]} : vector<8x128xf32> to vector<8x32xf32>
    %228 = math.tanh %227 : vector<8x32xf32>
    %229 = vector.extract_strided_slice %226 {offsets = [0, 0], sizes = [8, 32], strides = [1, 1]} : vector<8x96xf32> to vector<8x32xf32>
    %230 = vector.extract_strided_slice %226 {offsets = [0, 32], sizes = [8, 32], strides = [1, 1]} : vector<8x96xf32> to vector<8x32xf32>
    %231 = vector.extract_strided_slice %226 {offsets = [0, 64], sizes = [8, 32], strides = [1, 1]} : vector<8x96xf32> to vector<8x32xf32>
    %232 = arith.mulf %230, %184 : vector<8x32xf32>
    %233 = arith.mulf %229, %228 : vector<8x32xf32>
    %234 = arith.addf %232, %233 : vector<8x32xf32>
    %235 = math.tanh %234 : vector<8x32xf32>
    %236 = arith.mulf %231, %235 : vector<8x32xf32>
    %c7_i32_73 = arith.constant 7 : i32
    %237 = arith.subi %c7_i32_73, %c4_i32 : i32
    %c0_74 = arith.constant 0 : index
    %238 = arith.index_cast %237 : i32 to index
    %c0_75 = arith.constant 0 : index
    %c0_76 = arith.constant 0 : index
    %239 = vector.load %arg2[%c0_74, %238, %c0_75, %c0_76] : memref<1x8x8x128xf32, #tpu.memory_space<vmem>>, vector<1x1x8x128xf32>
    %240 = vector.shape_cast %239 : vector<1x1x8x128xf32> to vector<8x128xf32>
    %241 = arith.truncf %209 : vector<8x32xf32> to vector<8x32xbf16>
    %cst_77 = arith.constant dense<0.000000e+00> : vector<8x128xf32>
    %242 = tpu.matmul %241, %6, %cst_77 {dimension_numbers = #tpu.dot_dimension_numbers<[1], [0], [0], [1], [0, 0, 1, 1], [], []>} : vector<8x32xbf16>, vector<32x128xbf16>, vector<8x128xf32> -> vector<8x128xf32>
    %243 = arith.addf %240, %242 : vector<8x128xf32>
    %244 = vector.extract_strided_slice %243 {offsets = [0, 0], sizes = [8, 96], strides = [1, 1]} : vector<8x128xf32> to vector<8x96xf32>
    %245 = arith.negf %244 : vector<8x96xf32>
    %246 = math.exp %245 : vector<8x96xf32>
    %cst_78 = arith.constant 1.000000e+00 : f32
    %247 = vector.broadcast %cst_78 : f32 to vector<8x96xf32>
    %248 = arith.addf %247, %246 : vector<8x96xf32>
    %249 = arith.divf %247, %248 : vector<8x96xf32>
    %250 = vector.extract_strided_slice %243 {offsets = [0, 96], sizes = [8, 32], strides = [1, 1]} : vector<8x128xf32> to vector<8x32xf32>
    %251 = math.tanh %250 : vector<8x32xf32>
    %252 = vector.extract_strided_slice %249 {offsets = [0, 0], sizes = [8, 32], strides = [1, 1]} : vector<8x96xf32> to vector<8x32xf32>
    %253 = vector.extract_strided_slice %249 {offsets = [0, 32], sizes = [8, 32], strides = [1, 1]} : vector<8x96xf32> to vector<8x32xf32>
    %254 = vector.extract_strided_slice %249 {offsets = [0, 64], sizes = [8, 32], strides = [1, 1]} : vector<8x96xf32> to vector<8x32xf32>
    %255 = arith.mulf %253, %207 : vector<8x32xf32>
    %256 = arith.mulf %252, %251 : vector<8x32xf32>
    %257 = arith.addf %255, %256 : vector<8x32xf32>
    %258 = math.tanh %257 : vector<8x32xf32>
    %259 = arith.mulf %254, %258 : vector<8x32xf32>
    %260 = tpu.concatenate %236, %259 in 1 : vector<8x32xf32>, vector<8x32xf32> -> vector<8x64xf32>
    %261 = arith.index_cast %c4_i32 : i32 to index
    %c0_79 = arith.constant 0 : index
    %c0_80 = arith.constant 0 : index
    %262 = vector.load %arg4[%261, %c0_79, %c0_80] : memref<8x8x64xf32, #tpu.memory_space<vmem>>, vector<1x8x64xf32>
    %263 = vector.shape_cast %262 : vector<1x8x64xf32> to vector<8x64xf32>
    %264 = vector.shape_cast %260 : vector<8x64xf32> to vector<1x8x64xf32>
    tpu.vector_store %arg4[%261, %c0_79, %c0_80], %264 {strides = array<i32>} : memref<8x8x64xf32, #tpu.memory_space<vmem>>, vector<1x8x64xf32>,
    %c5_i32 = arith.constant 5 : i32
    %c0_81 = arith.constant 0 : index
    %265 = arith.index_cast %c5_i32 : i32 to index
    %c0_82 = arith.constant 0 : index
    %c0_83 = arith.constant 0 : index
    %266 = vector.load %arg1[%c0_81, %265, %c0_82, %c0_83] : memref<1x8x8x128xf32, #tpu.memory_space<vmem>>, vector<1x1x8x128xf32>
    %267 = vector.shape_cast %266 : vector<1x1x8x128xf32> to vector<8x128xf32>
    %268 = arith.truncf %236 : vector<8x32xf32> to vector<8x32xbf16>
    %cst_84 = arith.constant dense<0.000000e+00> : vector<8x128xf32>
    %269 = tpu.matmul %268, %4, %cst_84 {dimension_numbers = #tpu.dot_dimension_numbers<[1], [0], [0], [1], [0, 0, 1, 1], [], []>} : vector<8x32xbf16>, vector<32x128xbf16>, vector<8x128xf32> -> vector<8x128xf32>
    %270 = arith.addf %267, %269 : vector<8x128xf32>
    %271 = vector.extract_strided_slice %270 {offsets = [0, 0], sizes = [8, 96], strides = [1, 1]} : vector<8x128xf32> to vector<8x96xf32>
    %272 = arith.negf %271 : vector<8x96xf32>
    %273 = math.exp %272 : vector<8x96xf32>
    %cst_85 = arith.constant 1.000000e+00 : f32
    %274 = vector.broadcast %cst_85 : f32 to vector<8x96xf32>
    %275 = arith.addf %274, %273 : vector<8x96xf32>
    %276 = arith.divf %274, %275 : vector<8x96xf32>
    %277 = vector.extract_strided_slice %270 {offsets = [0, 96], sizes = [8, 32], strides = [1, 1]} : vector<8x128xf32> to vector<8x32xf32>
    %278 = math.tanh %277 : vector<8x32xf32>
    %279 = vector.extract_strided_slice %276 {offsets = [0, 0], sizes = [8, 32], strides = [1, 1]} : vector<8x96xf32> to vector<8x32xf32>
    %280 = vector.extract_strided_slice %276 {offsets = [0, 32], sizes = [8, 32], strides = [1, 1]} : vector<8x96xf32> to vector<8x32xf32>
    %281 = vector.extract_strided_slice %276 {offsets = [0, 64], sizes = [8, 32], strides = [1, 1]} : vector<8x96xf32> to vector<8x32xf32>
    %282 = arith.mulf %280, %234 : vector<8x32xf32>
    %283 = arith.mulf %279, %278 : vector<8x32xf32>
    %284 = arith.addf %282, %283 : vector<8x32xf32>
    %285 = math.tanh %284 : vector<8x32xf32>
    %286 = arith.mulf %281, %285 : vector<8x32xf32>
    %c7_i32_86 = arith.constant 7 : i32
    %287 = arith.subi %c7_i32_86, %c5_i32 : i32
    %c0_87 = arith.constant 0 : index
    %288 = arith.index_cast %287 : i32 to index
    %c0_88 = arith.constant 0 : index
    %c0_89 = arith.constant 0 : index
    %289 = vector.load %arg2[%c0_87, %288, %c0_88, %c0_89] : memref<1x8x8x128xf32, #tpu.memory_space<vmem>>, vector<1x1x8x128xf32>
    %290 = vector.shape_cast %289 : vector<1x1x8x128xf32> to vector<8x128xf32>
    %291 = arith.truncf %259 : vector<8x32xf32> to vector<8x32xbf16>
    %cst_90 = arith.constant dense<0.000000e+00> : vector<8x128xf32>
    %292 = tpu.matmul %291, %6, %cst_90 {dimension_numbers = #tpu.dot_dimension_numbers<[1], [0], [0], [1], [0, 0, 1, 1], [], []>} : vector<8x32xbf16>, vector<32x128xbf16>, vector<8x128xf32> -> vector<8x128xf32>
    %293 = arith.addf %290, %292 : vector<8x128xf32>
    %294 = vector.extract_strided_slice %293 {offsets = [0, 0], sizes = [8, 96], strides = [1, 1]} : vector<8x128xf32> to vector<8x96xf32>
    %295 = arith.negf %294 : vector<8x96xf32>
    %296 = math.exp %295 : vector<8x96xf32>
    %cst_91 = arith.constant 1.000000e+00 : f32
    %297 = vector.broadcast %cst_91 : f32 to vector<8x96xf32>
    %298 = arith.addf %297, %296 : vector<8x96xf32>
    %299 = arith.divf %297, %298 : vector<8x96xf32>
    %300 = vector.extract_strided_slice %293 {offsets = [0, 96], sizes = [8, 32], strides = [1, 1]} : vector<8x128xf32> to vector<8x32xf32>
    %301 = math.tanh %300 : vector<8x32xf32>
    %302 = vector.extract_strided_slice %299 {offsets = [0, 0], sizes = [8, 32], strides = [1, 1]} : vector<8x96xf32> to vector<8x32xf32>
    %303 = vector.extract_strided_slice %299 {offsets = [0, 32], sizes = [8, 32], strides = [1, 1]} : vector<8x96xf32> to vector<8x32xf32>
    %304 = vector.extract_strided_slice %299 {offsets = [0, 64], sizes = [8, 32], strides = [1, 1]} : vector<8x96xf32> to vector<8x32xf32>
    %305 = arith.mulf %303, %257 : vector<8x32xf32>
    %306 = arith.mulf %302, %301 : vector<8x32xf32>
    %307 = arith.addf %305, %306 : vector<8x32xf32>
    %308 = math.tanh %307 : vector<8x32xf32>
    %309 = arith.mulf %304, %308 : vector<8x32xf32>
    %310 = tpu.concatenate %286, %309 in 1 : vector<8x32xf32>, vector<8x32xf32> -> vector<8x64xf32>
    %311 = arith.index_cast %c5_i32 : i32 to index
    %c0_92 = arith.constant 0 : index
    %c0_93 = arith.constant 0 : index
    %312 = vector.load %arg4[%311, %c0_92, %c0_93] : memref<8x8x64xf32, #tpu.memory_space<vmem>>, vector<1x8x64xf32>
    %313 = vector.shape_cast %312 : vector<1x8x64xf32> to vector<8x64xf32>
    %314 = vector.shape_cast %310 : vector<8x64xf32> to vector<1x8x64xf32>
    tpu.vector_store %arg4[%311, %c0_92, %c0_93], %314 {strides = array<i32>} : memref<8x8x64xf32, #tpu.memory_space<vmem>>, vector<1x8x64xf32>,
    %c6_i32 = arith.constant 6 : i32
    %c0_94 = arith.constant 0 : index
    %315 = arith.index_cast %c6_i32 : i32 to index
    %c0_95 = arith.constant 0 : index
    %c0_96 = arith.constant 0 : index
    %316 = vector.load %arg1[%c0_94, %315, %c0_95, %c0_96] : memref<1x8x8x128xf32, #tpu.memory_space<vmem>>, vector<1x1x8x128xf32>
    %317 = vector.shape_cast %316 : vector<1x1x8x128xf32> to vector<8x128xf32>
    %318 = arith.truncf %286 : vector<8x32xf32> to vector<8x32xbf16>
    %cst_97 = arith.constant dense<0.000000e+00> : vector<8x128xf32>
    %319 = tpu.matmul %318, %4, %cst_97 {dimension_numbers = #tpu.dot_dimension_numbers<[1], [0], [0], [1], [0, 0, 1, 1], [], []>} : vector<8x32xbf16>, vector<32x128xbf16>, vector<8x128xf32> -> vector<8x128xf32>
    %320 = arith.addf %317, %319 : vector<8x128xf32>
    %321 = vector.extract_strided_slice %320 {offsets = [0, 0], sizes = [8, 96], strides = [1, 1]} : vector<8x128xf32> to vector<8x96xf32>
    %322 = arith.negf %321 : vector<8x96xf32>
    %323 = math.exp %322 : vector<8x96xf32>
    %cst_98 = arith.constant 1.000000e+00 : f32
    %324 = vector.broadcast %cst_98 : f32 to vector<8x96xf32>
    %325 = arith.addf %324, %323 : vector<8x96xf32>
    %326 = arith.divf %324, %325 : vector<8x96xf32>
    %327 = vector.extract_strided_slice %320 {offsets = [0, 96], sizes = [8, 32], strides = [1, 1]} : vector<8x128xf32> to vector<8x32xf32>
    %328 = math.tanh %327 : vector<8x32xf32>
    %329 = vector.extract_strided_slice %326 {offsets = [0, 0], sizes = [8, 32], strides = [1, 1]} : vector<8x96xf32> to vector<8x32xf32>
    %330 = vector.extract_strided_slice %326 {offsets = [0, 32], sizes = [8, 32], strides = [1, 1]} : vector<8x96xf32> to vector<8x32xf32>
    %331 = vector.extract_strided_slice %326 {offsets = [0, 64], sizes = [8, 32], strides = [1, 1]} : vector<8x96xf32> to vector<8x32xf32>
    %332 = arith.mulf %330, %284 : vector<8x32xf32>
    %333 = arith.mulf %329, %328 : vector<8x32xf32>
    %334 = arith.addf %332, %333 : vector<8x32xf32>
    %335 = math.tanh %334 : vector<8x32xf32>
    %336 = arith.mulf %331, %335 : vector<8x32xf32>
    %c7_i32_99 = arith.constant 7 : i32
    %337 = arith.subi %c7_i32_99, %c6_i32 : i32
    %c0_100 = arith.constant 0 : index
    %338 = arith.index_cast %337 : i32 to index
    %c0_101 = arith.constant 0 : index
    %c0_102 = arith.constant 0 : index
    %339 = vector.load %arg2[%c0_100, %338, %c0_101, %c0_102] : memref<1x8x8x128xf32, #tpu.memory_space<vmem>>, vector<1x1x8x128xf32>
    %340 = vector.shape_cast %339 : vector<1x1x8x128xf32> to vector<8x128xf32>
    %341 = arith.truncf %309 : vector<8x32xf32> to vector<8x32xbf16>
    %cst_103 = arith.constant dense<0.000000e+00> : vector<8x128xf32>
    %342 = tpu.matmul %341, %6, %cst_103 {dimension_numbers = #tpu.dot_dimension_numbers<[1], [0], [0], [1], [0, 0, 1, 1], [], []>} : vector<8x32xbf16>, vector<32x128xbf16>, vector<8x128xf32> -> vector<8x128xf32>
    %343 = arith.addf %340, %342 : vector<8x128xf32>
    %344 = vector.extract_strided_slice %343 {offsets = [0, 0], sizes = [8, 96], strides = [1, 1]} : vector<8x128xf32> to vector<8x96xf32>
    %345 = arith.negf %344 : vector<8x96xf32>
    %346 = math.exp %345 : vector<8x96xf32>
    %cst_104 = arith.constant 1.000000e+00 : f32
    %347 = vector.broadcast %cst_104 : f32 to vector<8x96xf32>
    %348 = arith.addf %347, %346 : vector<8x96xf32>
    %349 = arith.divf %347, %348 : vector<8x96xf32>
    %350 = vector.extract_strided_slice %343 {offsets = [0, 96], sizes = [8, 32], strides = [1, 1]} : vector<8x128xf32> to vector<8x32xf32>
    %351 = math.tanh %350 : vector<8x32xf32>
    %352 = vector.extract_strided_slice %349 {offsets = [0, 0], sizes = [8, 32], strides = [1, 1]} : vector<8x96xf32> to vector<8x32xf32>
    %353 = vector.extract_strided_slice %349 {offsets = [0, 32], sizes = [8, 32], strides = [1, 1]} : vector<8x96xf32> to vector<8x32xf32>
    %354 = vector.extract_strided_slice %349 {offsets = [0, 64], sizes = [8, 32], strides = [1, 1]} : vector<8x96xf32> to vector<8x32xf32>
    %355 = arith.mulf %353, %307 : vector<8x32xf32>
    %356 = arith.mulf %352, %351 : vector<8x32xf32>
    %357 = arith.addf %355, %356 : vector<8x32xf32>
    %358 = math.tanh %357 : vector<8x32xf32>
    %359 = arith.mulf %354, %358 : vector<8x32xf32>
    %360 = tpu.concatenate %336, %359 in 1 : vector<8x32xf32>, vector<8x32xf32> -> vector<8x64xf32>
    %361 = arith.index_cast %c6_i32 : i32 to index
    %c0_105 = arith.constant 0 : index
    %c0_106 = arith.constant 0 : index
    %362 = vector.load %arg4[%361, %c0_105, %c0_106] : memref<8x8x64xf32, #tpu.memory_space<vmem>>, vector<1x8x64xf32>
    %363 = vector.shape_cast %362 : vector<1x8x64xf32> to vector<8x64xf32>
    %364 = vector.shape_cast %360 : vector<8x64xf32> to vector<1x8x64xf32>
    tpu.vector_store %arg4[%361, %c0_105, %c0_106], %364 {strides = array<i32>} : memref<8x8x64xf32, #tpu.memory_space<vmem>>, vector<1x8x64xf32>,
    %c7_i32_107 = arith.constant 7 : i32
    %c0_108 = arith.constant 0 : index
    %365 = arith.index_cast %c7_i32_107 : i32 to index
    %c0_109 = arith.constant 0 : index
    %c0_110 = arith.constant 0 : index
    %366 = vector.load %arg1[%c0_108, %365, %c0_109, %c0_110] : memref<1x8x8x128xf32, #tpu.memory_space<vmem>>, vector<1x1x8x128xf32>
    %367 = vector.shape_cast %366 : vector<1x1x8x128xf32> to vector<8x128xf32>
    %368 = arith.truncf %336 : vector<8x32xf32> to vector<8x32xbf16>
    %cst_111 = arith.constant dense<0.000000e+00> : vector<8x128xf32>
    %369 = tpu.matmul %368, %4, %cst_111 {dimension_numbers = #tpu.dot_dimension_numbers<[1], [0], [0], [1], [0, 0, 1, 1], [], []>} : vector<8x32xbf16>, vector<32x128xbf16>, vector<8x128xf32> -> vector<8x128xf32>
    %370 = arith.addf %367, %369 : vector<8x128xf32>
    %371 = vector.extract_strided_slice %370 {offsets = [0, 0], sizes = [8, 96], strides = [1, 1]} : vector<8x128xf32> to vector<8x96xf32>
    %372 = arith.negf %371 : vector<8x96xf32>
    %373 = math.exp %372 : vector<8x96xf32>
    %cst_112 = arith.constant 1.000000e+00 : f32
    %374 = vector.broadcast %cst_112 : f32 to vector<8x96xf32>
    %375 = arith.addf %374, %373 : vector<8x96xf32>
    %376 = arith.divf %374, %375 : vector<8x96xf32>
    %377 = vector.extract_strided_slice %370 {offsets = [0, 96], sizes = [8, 32], strides = [1, 1]} : vector<8x128xf32> to vector<8x32xf32>
    %378 = math.tanh %377 : vector<8x32xf32>
    %379 = vector.extract_strided_slice %376 {offsets = [0, 0], sizes = [8, 32], strides = [1, 1]} : vector<8x96xf32> to vector<8x32xf32>
    %380 = vector.extract_strided_slice %376 {offsets = [0, 32], sizes = [8, 32], strides = [1, 1]} : vector<8x96xf32> to vector<8x32xf32>
    %381 = vector.extract_strided_slice %376 {offsets = [0, 64], sizes = [8, 32], strides = [1, 1]} : vector<8x96xf32> to vector<8x32xf32>
    %382 = arith.mulf %380, %334 : vector<8x32xf32>
    %383 = arith.mulf %379, %378 : vector<8x32xf32>
    %384 = arith.addf %382, %383 : vector<8x32xf32>
    %385 = math.tanh %384 : vector<8x32xf32>
    %386 = arith.mulf %381, %385 : vector<8x32xf32>
    %c7_i32_113 = arith.constant 7 : i32
    %387 = arith.subi %c7_i32_113, %c7_i32_107 : i32
    %c0_114 = arith.constant 0 : index
    %388 = arith.index_cast %387 : i32 to index
    %c0_115 = arith.constant 0 : index
    %c0_116 = arith.constant 0 : index
    %389 = vector.load %arg2[%c0_114, %388, %c0_115, %c0_116] : memref<1x8x8x128xf32, #tpu.memory_space<vmem>>, vector<1x1x8x128xf32>
    %390 = vector.shape_cast %389 : vector<1x1x8x128xf32> to vector<8x128xf32>
    %391 = arith.truncf %359 : vector<8x32xf32> to vector<8x32xbf16>
    %cst_117 = arith.constant dense<0.000000e+00> : vector<8x128xf32>
    %392 = tpu.matmul %391, %6, %cst_117 {dimension_numbers = #tpu.dot_dimension_numbers<[1], [0], [0], [1], [0, 0, 1, 1], [], []>} : vector<8x32xbf16>, vector<32x128xbf16>, vector<8x128xf32> -> vector<8x128xf32>
    %393 = arith.addf %390, %392 : vector<8x128xf32>
    %394 = vector.extract_strided_slice %393 {offsets = [0, 0], sizes = [8, 96], strides = [1, 1]} : vector<8x128xf32> to vector<8x96xf32>
    %395 = arith.negf %394 : vector<8x96xf32>
    %396 = math.exp %395 : vector<8x96xf32>
    %cst_118 = arith.constant 1.000000e+00 : f32
    %397 = vector.broadcast %cst_118 : f32 to vector<8x96xf32>
    %398 = arith.addf %397, %396 : vector<8x96xf32>
    %399 = arith.divf %397, %398 : vector<8x96xf32>
    %400 = vector.extract_strided_slice %393 {offsets = [0, 96], sizes = [8, 32], strides = [1, 1]} : vector<8x128xf32> to vector<8x32xf32>
    %401 = math.tanh %400 : vector<8x32xf32>
    %402 = vector.extract_strided_slice %399 {offsets = [0, 0], sizes = [8, 32], strides = [1, 1]} : vector<8x96xf32> to vector<8x32xf32>
    %403 = vector.extract_strided_slice %399 {offsets = [0, 32], sizes = [8, 32], strides = [1, 1]} : vector<8x96xf32> to vector<8x32xf32>
    %404 = vector.extract_strided_slice %399 {offsets = [0, 64], sizes = [8, 32], strides = [1, 1]} : vector<8x96xf32> to vector<8x32xf32>
    %405 = arith.mulf %403, %357 : vector<8x32xf32>
    %406 = arith.mulf %402, %401 : vector<8x32xf32>
    %407 = arith.addf %405, %406 : vector<8x32xf32>
    %408 = math.tanh %407 : vector<8x32xf32>
    %409 = arith.mulf %404, %408 : vector<8x32xf32>
    %410 = tpu.concatenate %386, %409 in 1 : vector<8x32xf32>, vector<8x32xf32> -> vector<8x64xf32>
    %411 = arith.index_cast %c7_i32_107 : i32 to index
    %c0_119 = arith.constant 0 : index
    %c0_120 = arith.constant 0 : index
    %412 = vector.load %arg4[%411, %c0_119, %c0_120] : memref<8x8x64xf32, #tpu.memory_space<vmem>>, vector<1x8x64xf32>
    %413 = vector.shape_cast %412 : vector<1x8x64xf32> to vector<8x64xf32>
    %414 = vector.shape_cast %410 : vector<8x64xf32> to vector<1x8x64xf32>
    tpu.vector_store %arg4[%411, %c0_119, %c0_120], %414 {strides = array<i32>} : memref<8x8x64xf32, #tpu.memory_space<vmem>>, vector<1x8x64xf32>,
    %c8_i32 = arith.constant 8 : i32
    %c0_121 = arith.constant 0 : index
    %c0_122 = arith.constant 0 : index
    %c0_123 = arith.constant 0 : index
    %415 = vector.load %arg5[%c0_121, %c0_122, %c0_123] : memref<2x8x32xf32, #tpu.memory_space<vmem>>, vector<1x8x32xf32>
    %416 = vector.shape_cast %415 : vector<1x8x32xf32> to vector<8x32xf32>
    %417 = vector.shape_cast %386 : vector<8x32xf32> to vector<1x8x32xf32>
    tpu.vector_store %arg5[%c0_121, %c0_122, %c0_123], %417 {strides = array<i32>} : memref<2x8x32xf32, #tpu.memory_space<vmem>>, vector<1x8x32xf32>,
    %c0_124 = arith.constant 0 : index
    %c0_125 = arith.constant 0 : index
    %c0_126 = arith.constant 0 : index
    %418 = vector.load %arg6[%c0_124, %c0_125, %c0_126] : memref<2x8x32xf32, #tpu.memory_space<vmem>>, vector<1x8x32xf32>
    %419 = vector.shape_cast %418 : vector<1x8x32xf32> to vector<8x32xf32>
    %420 = vector.shape_cast %384 : vector<8x32xf32> to vector<1x8x32xf32>
    tpu.vector_store %arg6[%c0_124, %c0_125, %c0_126], %420 {strides = array<i32>} : memref<2x8x32xf32, #tpu.memory_space<vmem>>, vector<1x8x32xf32>,
    %c1_127 = arith.constant 1 : index
    %c0_128 = arith.constant 0 : index
    %c0_129 = arith.constant 0 : index
    %421 = vector.load %arg5[%c1_127, %c0_128, %c0_129] : memref<2x8x32xf32, #tpu.memory_space<vmem>>, vector<1x8x32xf32>
    %422 = vector.shape_cast %421 : vector<1x8x32xf32> to vector<8x32xf32>
    %423 = vector.shape_cast %409 : vector<8x32xf32> to vector<1x8x32xf32>
    tpu.vector_store %arg5[%c1_127, %c0_128, %c0_129], %423 {strides = array<i32>} : memref<2x8x32xf32, #tpu.memory_space<vmem>>, vector<1x8x32xf32>,
    %c1_130 = arith.constant 1 : index
    %c0_131 = arith.constant 0 : index
    %c0_132 = arith.constant 0 : index
    %424 = vector.load %arg6[%c1_130, %c0_131, %c0_132] : memref<2x8x32xf32, #tpu.memory_space<vmem>>, vector<1x8x32xf32>
    %425 = vector.shape_cast %424 : vector<1x8x32xf32> to vector<8x32xf32>
    %426 = vector.shape_cast %407 : vector<8x32xf32> to vector<1x8x32xf32>
    tpu.vector_store %arg6[%c1_130, %c0_131, %c0_132], %426 {strides = array<i32>} : memref<2x8x32xf32, #tpu.memory_space<vmem>>, vector<1x8x32xf32>,
    return
  }
  func.func @transform_0(%arg0: i32) -> (i32, i32, i32, i32) {
    %c0_i32 = arith.constant 0 : i32
    %c0_i32_0 = arith.constant 0 : i32
    %c0_i32_1 = arith.constant 0 : i32
    %c0_i32_2 = arith.constant 0 : i32
    return %c0_i32, %arg0, %c0_i32_0, %c0_i32_1 : i32, i32, i32, i32
  }
  func.func @transform_1(%arg0: i32) -> (i32, i32, i32, i32) {
    %c0_i32 = arith.constant 0 : i32
    %0 = arith.subi %c0_i32, %arg0 : i32
    %c1_i32 = arith.constant 1 : i32
    %c0_i32_0 = arith.constant 0 : i32
    %c0_i32_1 = arith.constant 0 : i32
    %c0_i32_2 = arith.constant 0 : i32
    return %c1_i32, %0, %c0_i32_0, %c0_i32_1 : i32, i32, i32, i32
  }
  func.func @transform_2(%arg0: i32) -> (i32, i32, i32) {
    %c0_i32 = arith.constant 0 : i32
    %c0_i32_0 = arith.constant 0 : i32
    %c0_i32_1 = arith.constant 0 : i32
    %c0_i32_2 = arith.constant 0 : i32
    return %c0_i32, %c0_i32_0, %c0_i32_1 : i32, i32, i32
  }
  func.func @transform_3(%arg0: i32) -> (i32, i32, i32) {
    %c0_i32 = arith.constant 0 : i32
    %c0_i32_0 = arith.constant 0 : i32
    %c0_i32_1 = arith.constant 0 : i32
    return %arg0, %c0_i32, %c0_i32_0 : i32, i32, i32
  }
}

</mosaic_0001>

<llo_original>
// kernel: blstm_forward.1
$region0: #{blstm_forward.1}
  #allocation0 [shape = 'u32[]', space=smem, size = 0x4, offset = 0x4, fixed_abs, tag = 'smem constant byte address 0x4 - core index']
  #allocation1 [shape = 'u32[144,128]{1,0:T(1,128)}', space=vmem, size = 0x12000, scoped, tag = 'internal scratch']
  #allocation2 [shape = 'f32[2,8,32]{2,1,0:T(8,128)}', space=vmem, size = 0x2000, scoped, tag = 'scratch operand']
  #allocation3 [shape = 'f32[2,8,32]{2,1,0:T(8,128)}', space=vmem, size = 0x2000, scoped, tag = 'scratch operand']
  %s0 = inlined_call_operand.vmem [shape: f32[2,8,8,128], index: 0, kind: input, shape index: {}, may-alias: {0,1}]
  %s1 = inlined_call_operand.vmem [shape: f32[2,8,8,128], index: 1, kind: input, shape index: {}, may-alias: {0,1}]
  %s2 = inlined_call_operand.vmem [shape: bf16[2,32,128], index: 2, kind: input, shape index: {}]
  %s3 = inlined_call_operand.vmem [shape: f32[8,8,64], index: 3, kind: output, shape index: {}]
  %s4 = sld [smem:[#allocation0]]
  $region26: #{blstm_forward.1} parent=0
    _
  %s6 = ssub.s32 1, %s4
  %s7 = scalar_select 0, %s6, %s4
  // Predicated region
  $region2: #{blstm_forward.1} parent=0 // pred_check
    _
  $region3: #{blstm_forward.1} parent=0 // pred_check_branch
    %9 = sbr.rel (0) target = $region5
  $region4: #{blstm_forward.1} parent=0 // pred_region
    _
  $region5: #{blstm_forward.1} parent=0 // pred_fallthru
    _
  // Predicated region
  $region6: #{blstm_forward.1} parent=0 // pred_check
    _
  $region7: #{blstm_forward.1} parent=0 // pred_check_branch
    %11 = sbr.rel (0) target = $region9
  $region8: #{blstm_forward.1} parent=0 // pred_region
    %s12 = ssub.s32 0, 0
    %s13 = smul.u32 8, %s12
    %p14 = scmp.lt.s32.totalorder %s13, 7
    %s15 = scalar_select %p14, %s13, 7
    %s16 = sadd.s32 %s15, 8
    %s17 = smul.addr %s16, 8
    %s18 = scalar_lea.vmem %s1, %s17
    %s19 = ssub.s32 0, 0
    %s20 = smul.u32 8, %s19
  $region9: #{blstm_forward.1} parent=0 // pred_fallthru
    _
  // Predicated region
  $region10: #{blstm_forward.1} parent=0 // pred_check
    _
  $region11: #{blstm_forward.1} parent=0 // pred_check_branch
    %22 = sbr.rel (0) target = $region13
  $region12: #{blstm_forward.1} parent=0 // pred_region
    _
  $region13: #{blstm_forward.1} parent=0 // pred_fallthru
    _
  %s23 = ssub.s32 0, 0
  %s24 = smul.u32 8, %s23
  %p25 = scmp.lt.s32.totalorder %s24, 7
  %s26 = scalar_select %p25, %s24, 7
  %s27 = sadd.s32 %s26, 8
  %s28 = smul.addr %s27, 8
  %s29 = scalar_lea.vmem %s1, %s28
  %s30 = ssub.s32 0, 0
  %s31 = smul.u32 8, %s30
  %p32 = scmp.lt.s32.totalorder %s31, 7
  %s33 = scalar_select %p32, %s31, 7
  %s34 = sadd.s32 %s33, 8
  %s35 = smul.addr %s34, 8
  %s36 = scalar_lea.vmem %s1, %s35
  %s37 = ssub.s32 0, 0
  %s38 = smul.u32 8, %s37
  %p40 = scmp.eq.s32.totalorder 0, 0
  // Predicated region
  $region14: #{blstm_forward.1} parent=0 // pred_check
    %p41 = pneg %p40
  $region15: #{blstm_forward.1} parent=0 // pred_check_branch
    %43 = sbr.rel (%p41) target = $region17
  $region16: #{blstm_forward.1} parent=0 // pred_region
    %vm44 = vcmask 261120
    %45 = vst.msk [vmem:[#allocation2] sm:$0xff] %vm44, 0.0
    %46 = vst.msk [vmem:[#allocation2 + $0x8] sm:$0xff] %vm44, 0.0
    %47 = vst.msk [vmem:[#allocation3] sm:$0xff] %vm44, 0.0
    %48 = vst.msk [vmem:[#allocation3 + $0x8] sm:$0xff] %vm44, 0.0
  $region17: #{blstm_forward.1} parent=0 // pred_fallthru
    _
  %v49 = vld [vmem:[%s2] sm:$0xf]
  %v50 = vld [vmem:[%s2 + $0x4] sm:$0xf]
  %v51 = vld [vmem:[%s2 + $0x8] sm:$0xf]
  %v52 = vld [vmem:[%s2 + $0xc] sm:$0xf]
  %s53 = scalar_lea.vmem %s2, 16
  %v54 = vld [vmem:[%s53] sm:$0xf]
  %v55 = vld [vmem:[%s53 + $0x4] sm:$0xf]
  %v56 = vld [vmem:[%s53 + $0x8] sm:$0xf]
  %v57 = vld [vmem:[%s53 + $0xc] sm:$0xf]
  %v58 = vld [vmem:[#allocation2] sm:$0xff]
  %v59 = vld [vmem:[#allocation3] sm:$0xff]
  %s60 = scalar_lea.vmem [#allocation2], 8
  %v61 = vld [vmem:[%s60] sm:$0xff]
  %s62 = scalar_lea.vmem [#allocation3], 8
  %v63 = vld [vmem:[%s62] sm:$0xff]
  %v64 = vld [vmem:[%s0] sm:$0xff]
  %v65 = vpack.c.bf16 %v58, %v58
  %v70 = vunpack.c.l.b16 %v49
  %v71 = vunpack.c.l.b16 %v50
  %v72 = vunpack.c.l.b16 %v51
  %v73 = vunpack.c.l.b16 %v52
  %v74 = vpack.c.b16 %v71, %v70
  %v75 = vpack.c.b16 %v73, %v72
  %vm78 = vcmask 261120
  %v80 = vsel %vm78, %v65, 0
  %82 = vmatprep.subr.bf16.mxu0 0
  %83 = vmatpush1.bf16.msra.mxu0 %v74
  %84 = vmatprep.subr.bf16.mxu0 0
  %85 = vmatpush1.bf16.msra.mxu0 %v75
  %86 = vmatprep.subr.bf16.mxu0 0
  %87 = vmatpush1.bf16.msra.mxu0 0
  %88 = vmatprep.subr.bf16.mxu0 0
  %89 = vmatpush1.bf16.msra.mxu0 0
  %90 = vmatprep.subr.bf16.mxu0 0
  %91 = vmatpush1.bf16.msra.mxu0 0
  %92 = vmatprep.subr.bf16.mxu0 0
  %93 = vmatpush1.bf16.msra.mxu0 0
  %94 = vmatprep.subr.bf16.mxu0 0
  %95 = vmatpush1.bf16.msra.mxu0 0
  %96 = vmatprep.subr.bf16.mxu0 0
  %97 = vmatpush1.bf16.msra.mxu0 0
  %98 = vmatprep.subr.bf16.mxu0 0
  %99 = vmatpush1.bf16.msra.mxu0 0
  %100 = vmatprep.subr.bf16.mxu0 0
  %101 = vmatpush1.bf16.msra.mxu0 0
  %102 = vmatprep.subr.bf16.mxu0 0
  %103 = vmatpush1.bf16.msra.mxu0 0
  %104 = vmatprep.subr.bf16.mxu0 0
  %105 = vmatpush1.bf16.msra.mxu0 0
  %106 = vmatprep.subr.bf16.mxu0 0
  %107 = vmatpush1.bf16.msra.mxu0 0
  %108 = vmatprep.subr.bf16.mxu0 0
  %109 = vmatpush1.bf16.msra.mxu0 0
  %110 = vmatprep.subr.bf16.mxu0 0
  %111 = vmatpush1.bf16.msra.mxu0 0
  %112 = vmatprep.subr.bf16.mxu0 0
  %113 = vmatpush1.bf16.msra.mxu0 0
  %114 = vmatprep.mubr.bf16.mxu0 0
  %115 = vmatmul.mubr.bf16.gmra.mrb[0].mxu0 %v80
  %v116 = vpop.f32.mrb[0].mxu0
  %v117 = vadd.f32 0.0, %v116
  %v118 = vpop.f32.mrb[0].mxu0
  %v119 = vpop.f32.mrb[0].mxu0
  %v120 = vpop.f32.mrb[0].mxu0
  %121 = vdwg.mxu0
  %v122 = vadd.f32 %v64, %v117
  %v123 = vxor.u32 %v122, 2147483648
  %v124 = vmul.f32 %v123, 1.442695
  %v125 = vpow.pop %v124
  %v126 = vadd.f32 %v125, 1.0
  %v127 = vrcp.pop %v126
  %v128 = vmul.f32 1.0, %v127
  %v129 = vtanh.pop %v122
  %131 = vrot.lane.b32.xlu0 %v59, 32
  %v132 = vpop.permute.xlu0 %131
  %v134 = vmul.f32 %v128, %v132
  %136 = vrot.lane.b32.xlu0 %v129, 32
  %v137 = vpop.permute.xlu0 %136
  %v139 = vmul.f32 %v128, %v137
  %141 = vrot.lane.b32.xlu0 %v139, 32
  %v142 = vpop.permute.xlu0 %141
  %v144 = vadd.f32 %v134, %v142
  %v145 = vtanh.pop %v144
  %147 = vrot.lane.b32.xlu0 %v145, 32
  %v148 = vpop.permute.xlu0 %147
  %v150 = vmul.f32 %v128, %v148
  %s151 = scalar_lea.vmem %s36, 56
  %v152 = vld [vmem:[%s151] sm:$0xff]
  %v153 = vpack.c.bf16 %v61, %v61
  %v158 = vunpack.c.l.b16 %v54
  %v159 = vunpack.c.l.b16 %v55
  %v160 = vunpack.c.l.b16 %v56
  %v161 = vunpack.c.l.b16 %v57
  %v162 = vpack.c.b16 %v159, %v158
  %v163 = vpack.c.b16 %v161, %v160
  %v167 = vsel %vm78, %v153, 0
  %169 = vmatprep.subr.bf16.mxu0 0
  %170 = vmatpush1.bf16.msra.mxu0 %v162
  %171 = vmatprep.subr.bf16.mxu0 0
  %172 = vmatpush1.bf16.msra.mxu0 %v163
  %173 = vmatprep.subr.bf16.mxu0 0
  %174 = vmatpush1.bf16.msra.mxu0 0
  %175 = vmatprep.subr.bf16.mxu0 0
  %176 = vmatpush1.bf16.msra.mxu0 0
  %177 = vmatprep.subr.bf16.mxu0 0
  %178 = vmatpush1.bf16.msra.mxu0 0
  %179 = vmatprep.subr.bf16.mxu0 0
  %180 = vmatpush1.bf16.msra.mxu0 0
  %181 = vmatprep.subr.bf16.mxu0 0
  %182 = vmatpush1.bf16.msra.mxu0 0
  %183 = vmatprep.subr.bf16.mxu0 0
  %184 = vmatpush1.bf16.msra.mxu0 0
  %185 = vmatprep.subr.bf16.mxu0 0
  %186 = vmatpush1.bf16.msra.mxu0 0
  %187 = vmatprep.subr.bf16.mxu0 0
  %188 = vmatpush1.bf16.msra.mxu0 0
  %189 = vmatprep.subr.bf16.mxu0 0
  %190 = vmatpush1.bf16.msra.mxu0 0
  %191 = vmatprep.subr.bf16.mxu0 0
  %192 = vmatpush1.bf16.msra.mxu0 0
  %193 = vmatprep.subr.bf16.mxu0 0
  %194 = vmatpush1.bf16.msra.mxu0 0
  %195 = vmatprep.subr.bf16.mxu0 0
  %196 = vmatpush1.bf16.msra.mxu0 0
  %197 = vmatprep.subr.bf16.mxu0 0
  %198 = vmatpush1.bf16.msra.mxu0 0
  %199 = vmatprep.subr.bf16.mxu0 0
  %200 = vmatpush1.bf16.msra.mxu0 0
  %201 = vmatprep.mubr.bf16.mxu0 0
  %202 = vmatmul.mubr.bf16.gmra.mrb[0].mxu0 %v167
  %v203 = vpop.f32.mrb[0].mxu0
  %v204 = vadd.f32 0.0, %v203
  %v205 = vpop.f32.mrb[0].mxu0
  %v206 = vpop.f32.mrb[0].mxu0
  %v207 = vpop.f32.mrb[0].mxu0
  %208 = vdwg.mxu0
  %v209 = vadd.f32 %v152, %v204
  %v210 = vxor.u32 %v209, 2147483648
  %v211 = vmul.f32 %v210, 1.442695
  %v212 = vpow.pop %v211
  %v213 = vadd.f32 %v212, 1.0
  %v214 = vrcp.pop %v213
  %v215 = vmul.f32 1.0, %v214
  %v216 = vtanh.pop %v209
  %218 = vrot.lane.b32.xlu0 %v63, 32
  %v219 = vpop.permute.xlu0 %218
  %v221 = vmul.f32 %v215, %v219
  %223 = vrot.lane.b32.xlu0 %v216, 32
  %v224 = vpop.permute.xlu0 %223
  %v226 = vmul.f32 %v215, %v224
  %228 = vrot.lane.b32.xlu0 %v226, 32
  %v229 = vpop.permute.xlu0 %228
  %v231 = vadd.f32 %v221, %v229
  %v232 = vtanh.pop %v231
  %234 = vrot.lane.b32.xlu0 %v232, 32
  %v235 = vpop.permute.xlu0 %234
  %v237 = vmul.f32 %v215, %v235
  %239 = vrot.lane.b32.xlu0 %v150, 64
  %v240 = vpop.permute.xlu0 %239
  %243 = vrot.lane.b32.xlu0 %v237, 96
  %v244 = vpop.permute.xlu0 %243
  %v246 = vsel %vm78, %v240, %v244
  %vm247 = vcmask 523264
  %248 = vst.msk [vmem:[%s3] sm:$0xff] %vm247, %v246
  %s249 = scalar_lea.vmem %s0, 8
  %v250 = vld [vmem:[%s249] sm:$0xff]
  %v251 = vpack.c.bf16 %v150, %v150
  %253 = vrot.lane.b32.xlu0 %v251, 64
  %v254 = vpop.permute.xlu0 %253
  %v256 = vsel %vm78, %v254, 0
  %258 = vmatprep.subr.bf16.mxu0 0
  %259 = vmatpush1.bf16.msra.mxu0 %v74
  %260 = vmatprep.subr.bf16.mxu0 0
  %261 = vmatpush1.bf16.msra.mxu0 %v75
  %262 = vmatprep.subr.bf16.mxu0 0
  %263 = vmatpush1.bf16.msra.mxu0 0
  %264 = vmatprep.subr.bf16.mxu0 0
  %265 = vmatpush1.bf16.msra.mxu0 0
  %266 = vmatprep.subr.bf16.mxu0 0
  %267 = vmatpush1.bf16.msra.mxu0 0
  %268 = vmatprep.subr.bf16.mxu0 0
  %269 = vmatpush1.bf16.msra.mxu0 0
  %270 = vmatprep.subr.bf16.mxu0 0
  %271 = vmatpush1.bf16.msra.mxu0 0
  %272 = vmatprep.subr.bf16.mxu0 0
  %273 = vmatpush1.bf16.msra.mxu0 0
  %274 = vmatprep.subr.bf16.mxu0 0
  %275 = vmatpush1.bf16.msra.mxu0 0
  %276 = vmatprep.subr.bf16.mxu0 0
  %277 = vmatpush1.bf16.msra.mxu0 0
  %278 = vmatprep.subr.bf16.mxu0 0
  %279 = vmatpush1.bf16.msra.mxu0 0
  %280 = vmatprep.subr.bf16.mxu0 0
  %281 = vmatpush1.bf16.msra.mxu0 0
  %282 = vmatprep.subr.bf16.mxu0 0
  %283 = vmatpush1.bf16.msra.mxu0 0
  %284 = vmatprep.subr.bf16.mxu0 0
  %285 = vmatpush1.bf16.msra.mxu0 0
  %286 = vmatprep.subr.bf16.mxu0 0
  %287 = vmatpush1.bf16.msra.mxu0 0
  %288 = vmatprep.subr.bf16.mxu0 0
  %289 = vmatpush1.bf16.msra.mxu0 0
  %290 = vmatprep.mubr.bf16.mxu0 0
  %291 = vmatmul.mubr.bf16.gmra.mrb[0].mxu0 %v256
  %v292 = vpop.f32.mrb[0].mxu0
  %v293 = vadd.f32 0.0, %v292
  %v294 = vpop.f32.mrb[0].mxu0
  %v295 = vpop.f32.mrb[0].mxu0
  %v296 = vpop.f32.mrb[0].mxu0
  %297 = vdwg.mxu0
  %v298 = vadd.f32 %v250, %v293
  %v299 = vxor.u32 %v298, 2147483648
  %v300 = vmul.f32 %v299, 1.442695
  %v301 = vpow.pop %v300
  %v302 = vadd.f32 %v301, 1.0
  %v303 = vrcp.pop %v302
  %v304 = vmul.f32 1.0, %v303
  %v305 = vtanh.pop %v298
  %v306 = vmul.f32 %v304, %v144
  %308 = vrot.lane.b32.xlu0 %v305, 32
  %v309 = vpop.permute.xlu0 %308
  %v311 = vmul.f32 %v304, %v309
  %313 = vrot.lane.b32.xlu0 %v311, 32
  %v314 = vpop.permute.xlu0 %313
  %v316 = vadd.f32 %v306, %v314
  %v317 = vtanh.pop %v316
  %319 = vrot.lane.b32.xlu0 %v317, 32
  %v320 = vpop.permute.xlu0 %319
  %v322 = vmul.f32 %v304, %v320
  %s323 = scalar_lea.vmem %s36, 48
  %v324 = vld [vmem:[%s323] sm:$0xff]
  %v325 = vpack.c.bf16 %v237, %v237
  %327 = vrot.lane.b32.xlu0 %v325, 64
  %v328 = vpop.permute.xlu0 %327
  %v330 = vsel %vm78, %v328, 0
  %332 = vmatprep.subr.bf16.mxu0 0
  %333 = vmatpush1.bf16.msra.mxu0 %v162
  %334 = vmatprep.subr.bf16.mxu0 0
  %335 = vmatpush1.bf16.msra.mxu0 %v163
  %336 = vmatprep.subr.bf16.mxu0 0
  %337 = vmatpush1.bf16.msra.mxu0 0
  %338 = vmatprep.subr.bf16.mxu0 0
  %339 = vmatpush1.bf16.msra.mxu0 0
  %340 = vmatprep.subr.bf16.mxu0 0
  %341 = vmatpush1.bf16.msra.mxu0 0
  %342 = vmatprep.subr.bf16.mxu0 0
  %343 = vmatpush1.bf16.msra.mxu0 0
  %344 = vmatprep.subr.bf16.mxu0 0
  %345 = vmatpush1.bf16.msra.mxu0 0
  %346 = vmatprep.subr.bf16.mxu0 0
  %347 = vmatpush1.bf16.msra.mxu0 0
  %348 = vmatprep.subr.bf16.mxu0 0
  %349 = vmatpush1.bf16.msra.mxu0 0
  %350 = vmatprep.subr.bf16.mxu0 0
  %351 = vmatpush1.bf16.msra.mxu0 0
  %352 = vmatprep.subr.bf16.mxu0 0
  %353 = vmatpush1.bf16.msra.mxu0 0
  %354 = vmatprep.subr.bf16.mxu0 0
  %355 = vmatpush1.bf16.msra.mxu0 0
  %356 = vmatprep.subr.bf16.mxu0 0
  %357 = vmatpush1.bf16.msra.mxu0 0
  %358 = vmatprep.subr.bf16.mxu0 0
  %359 = vmatpush1.bf16.msra.mxu0 0
  %360 = vmatprep.subr.bf16.mxu0 0
  %361 = vmatpush1.bf16.msra.mxu0 0
  %362 = vmatprep.subr.bf16.mxu0 0
  %363 = vmatpush1.bf16.msra.mxu0 0
  %364 = vmatprep.mubr.bf16.mxu0 0
  %365 = vmatmul.mubr.bf16.gmra.mrb[0].mxu0 %v330
  %v366 = vpop.f32.mrb[0].mxu0
  %v367 = vadd.f32 0.0, %v366
  %v368 = vpop.f32.mrb[0].mxu0
  %v369 = vpop.f32.mrb[0].mxu0
  %v370 = vpop.f32.mrb[0].mxu0
  %371 = vdwg.mxu0
  %v372 = vadd.f32 %v324, %v367
  %v373 = vxor.u32 %v372, 2147483648
  %v374 = vmul.f32 %v373, 1.442695
  %v375 = vpow.pop %v374
  %v376 = vadd.f32 %v375, 1.0
  %v377 = vrcp.pop %v376
  %v378 = vmul.f32 1.0, %v377
  %v379 = vtanh.pop %v372
  %v380 = vmul.f32 %v378, %v231
  %382 = vrot.lane.b32.xlu0 %v379, 32
  %v383 = vpop.permute.xlu0 %382
  %v385 = vmul.f32 %v378, %v383
  %387 = vrot.lane.b32.xlu0 %v385, 32
  %v388 = vpop.permute.xlu0 %387
  %v390 = vadd.f32 %v380, %v388
  %v391 = vtanh.pop %v390
  %393 = vrot.lane.b32.xlu0 %v391, 32
  %v394 = vpop.permute.xlu0 %393
  %v396 = vmul.f32 %v378, %v394
  %398 = vrot.lane.b32.xlu0 %v322, 64
  %v399 = vpop.permute.xlu0 %398
  %402 = vrot.lane.b32.xlu0 %v396, 96
  %v403 = vpop.permute.xlu0 %402
  %v405 = vsel %vm78, %v399, %v403
  %s406 = scalar_lea.vmem %s3, 8
  %407 = vst.msk [vmem:[%s406] sm:$0xff] %vm247, %v405
  %s408 = scalar_lea.vmem %s0, 16
  %v409 = vld [vmem:[%s408] sm:$0xff]
  %v410 = vpack.c.bf16 %v322, %v322
  %412 = vrot.lane.b32.xlu0 %v410, 64
  %v413 = vpop.permute.xlu0 %412
  %v415 = vsel %vm78, %v413, 0
  %417 = vmatprep.subr.bf16.mxu0 0
  %418 = vmatpush1.bf16.msra.mxu0 %v74
  %419 = vmatprep.subr.bf16.mxu0 0
  %420 = vmatpush1.bf16.msra.mxu0 %v75
  %421 = vmatprep.subr.bf16.mxu0 0
  %422 = vmatpush1.bf16.msra.mxu0 0
  %423 = vmatprep.subr.bf16.mxu0 0
  %424 = vmatpush1.bf16.msra.mxu0 0
  %425 = vmatprep.subr.bf16.mxu0 0
  %426 = vmatpush1.bf16.msra.mxu0 0
  %427 = vmatprep.subr.bf16.mxu0 0
  %428 = vmatpush1.bf16.msra.mxu0 0
  %429 = vmatprep.subr.bf16.mxu0 0
  %430 = vmatpush1.bf16.msra.mxu0 0
  %431 = vmatprep.subr.bf16.mxu0 0
  %432 = vmatpush1.bf16.msra.mxu0 0
  %433 = vmatprep.subr.bf16.mxu0 0
  %434 = vmatpush1.bf16.msra.mxu0 0
  %435 = vmatprep.subr.bf16.mxu0 0
  %436 = vmatpush1.bf16.msra.mxu0 0
  %437 = vmatprep.subr.bf16.mxu0 0
  %438 = vmatpush1.bf16.msra.mxu0 0
  %439 = vmatprep.subr.bf16.mxu0 0
  %440 = vmatpush1.bf16.msra.mxu0 0
  %441 = vmatprep.subr.bf16.mxu0 0
  %442 = vmatpush1.bf16.msra.mxu0 0
  %443 = vmatprep.subr.bf16.mxu0 0
  %444 = vmatpush1.bf16.msra.mxu0 0
  %445 = vmatprep.subr.bf16.mxu0 0
  %446 = vmatpush1.bf16.msra.mxu0 0
  %447 = vmatprep.subr.bf16.mxu0 0
  %448 = vmatpush1.bf16.msra.mxu0 0
  %449 = vmatprep.mubr.bf16.mxu0 0
  %450 = vmatmul.mubr.bf16.gmra.mrb[0].mxu0 %v415
  %v451 = vpop.f32.mrb[0].mxu0
  %v452 = vadd.f32 0.0, %v451
  %v453 = vpop.f32.mrb[0].mxu0
  %v454 = vpop.f32.mrb[0].mxu0
  %v455 = vpop.f32.mrb[0].mxu0
  %456 = vdwg.mxu0
  %v457 = vadd.f32 %v409, %v452
  %v458 = vxor.u32 %v457, 2147483648
  %v459 = vmul.f32 %v458, 1.442695
  %v460 = vpow.pop %v459
  %v461 = vadd.f32 %v460, 1.0
  %v462 = vrcp.pop %v461
  %v463 = vmul.f32 1.0, %v462
  %v464 = vtanh.pop %v457
  %v465 = vmul.f32 %v463, %v316
  %467 = vrot.lane.b32.xlu0 %v464, 32
  %v468 = vpop.permute.xlu0 %467
  %v470 = vmul.f32 %v463, %v468
  %472 = vrot.lane.b32.xlu0 %v470, 32
  %v473 = vpop.permute.xlu0 %472
  %v475 = vadd.f32 %v465, %v473
  %v476 = vtanh.pop %v475
  %478 = vrot.lane.b32.xlu0 %v476, 32
  %v479 = vpop.permute.xlu0 %478
  %v481 = vmul.f32 %v463, %v479
  %s482 = scalar_lea.vmem %s36, 40
  %v483 = vld [vmem:[%s482] sm:$0xff]
  %v484 = vpack.c.bf16 %v396, %v396
  %486 = vrot.lane.b32.xlu0 %v484, 64
  %v487 = vpop.permute.xlu0 %486
  %v489 = vsel %vm78, %v487, 0
  %491 = vmatprep.subr.bf16.mxu0 0
  %492 = vmatpush1.bf16.msra.mxu0 %v162
  %493 = vmatprep.subr.bf16.mxu0 0
  %494 = vmatpush1.bf16.msra.mxu0 %v163
  %495 = vmatprep.subr.bf16.mxu0 0
  %496 = vmatpush1.bf16.msra.mxu0 0
  %497 = vmatprep.subr.bf16.mxu0 0
  %498 = vmatpush1.bf16.msra.mxu0 0
  %499 = vmatprep.subr.bf16.mxu0 0
  %500 = vmatpush1.bf16.msra.mxu0 0
  %501 = vmatprep.subr.bf16.mxu0 0
  %502 = vmatpush1.bf16.msra.mxu0 0
  %503 = vmatprep.subr.bf16.mxu0 0
  %504 = vmatpush1.bf16.msra.mxu0 0
  %505 = vmatprep.subr.bf16.mxu0 0
  %506 = vmatpush1.bf16.msra.mxu0 0
  %507 = vmatprep.subr.bf16.mxu0 0
  %508 = vmatpush1.bf16.msra.mxu0 0
  %509 = vmatprep.subr.bf16.mxu0 0
  %510 = vmatpush1.bf16.msra.mxu0 0
  %511 = vmatprep.subr.bf16.mxu0 0
  %512 = vmatpush1.bf16.msra.mxu0 0
  %513 = vmatprep.subr.bf16.mxu0 0
  %514 = vmatpush1.bf16.msra.mxu0 0
  %515 = vmatprep.subr.bf16.mxu0 0
  %516 = vmatpush1.bf16.msra.mxu0 0
  %517 = vmatprep.subr.bf16.mxu0 0
  %518 = vmatpush1.bf16.msra.mxu0 0
  %519 = vmatprep.subr.bf16.mxu0 0
  %520 = vmatpush1.bf16.msra.mxu0 0
  %521 = vmatprep.subr.bf16.mxu0 0
  %522 = vmatpush1.bf16.msra.mxu0 0
  %523 = vmatprep.mubr.bf16.mxu0 0
  %524 = vmatmul.mubr.bf16.gmra.mrb[0].mxu0 %v489
  %v525 = vpop.f32.mrb[0].mxu0
  %v526 = vadd.f32 0.0, %v525
  %v527 = vpop.f32.mrb[0].mxu0
  %v528 = vpop.f32.mrb[0].mxu0
  %v529 = vpop.f32.mrb[0].mxu0
  %530 = vdwg.mxu0
  %v531 = vadd.f32 %v483, %v526
  %v532 = vxor.u32 %v531, 2147483648
  %v533 = vmul.f32 %v532, 1.442695
  %v534 = vpow.pop %v533
  %v535 = vadd.f32 %v534, 1.0
  %v536 = vrcp.pop %v535
  %v537 = vmul.f32 1.0, %v536
  %v538 = vtanh.pop %v531
  %v539 = vmul.f32 %v537, %v390
  %541 = vrot.lane.b32.xlu0 %v538, 32
  %v542 = vpop.permute.xlu0 %541
  %v544 = vmul.f32 %v537, %v542
  %546 = vrot.lane.b32.xlu0 %v544, 32
  %v547 = vpop.permute.xlu0 %546
  %v549 = vadd.f32 %v539, %v547
  %v550 = vtanh.pop %v549
  %552 = vrot.lane.b32.xlu0 %v550, 32
  %v553 = vpop.permute.xlu0 %552
  %v555 = vmul.f32 %v537, %v553
  %557 = vrot.lane.b32.xlu0 %v481, 64
  %v558 = vpop.permute.xlu0 %557
  %561 = vrot.lane.b32.xlu0 %v555, 96
  %v562 = vpop.permute.xlu0 %561
  %v564 = vsel %vm78, %v558, %v562
  %s565 = scalar_lea.vmem %s3, 16
  %566 = vst.msk [vmem:[%s565] sm:$0xff] %vm247, %v564
  %s567 = scalar_lea.vmem %s0, 24
  %v568 = vld [vmem:[%s567] sm:$0xff]
  %v569 = vpack.c.bf16 %v481, %v481
  %571 = vrot.lane.b32.xlu0 %v569, 64
  %v572 = vpop.permute.xlu0 %571
  %v574 = vsel %vm78, %v572, 0
  %576 = vmatprep.subr.bf16.mxu0 0
  %577 = vmatpush1.bf16.msra.mxu0 %v74
  %578 = vmatprep.subr.bf16.mxu0 0
  %579 = vmatpush1.bf16.msra.mxu0 %v75
  %580 = vmatprep.subr.bf16.mxu0 0
  %581 = vmatpush1.bf16.msra.mxu0 0
  %582 = vmatprep.subr.bf16.mxu0 0
  %583 = vmatpush1.bf16.msra.mxu0 0
  %584 = vmatprep.subr.bf16.mxu0 0
  %585 = vmatpush1.bf16.msra.mxu0 0
  %586 = vmatprep.subr.bf16.mxu0 0
  %587 = vmatpush1.bf16.msra.mxu0 0
  %588 = vmatprep.subr.bf16.mxu0 0
  %589 = vmatpush1.bf16.msra.mxu0 0
  %590 = vmatprep.subr.bf16.mxu0 0
  %591 = vmatpush1.bf16.msra.mxu0 0
  %592 = vmatprep.subr.bf16.mxu0 0
  %593 = vmatpush1.bf16.msra.mxu0 0
  %594 = vmatprep.subr.bf16.mxu0 0
  %595 = vmatpush1.bf16.msra.mxu0 0
  %596 = vmatprep.subr.bf16.mxu0 0
  %597 = vmatpush1.bf16.msra.mxu0 0
  %598 = vmatprep.subr.bf16.mxu0 0
  %599 = vmatpush1.bf16.msra.mxu0 0
  %600 = vmatprep.subr.bf16.mxu0 0
  %601 = vmatpush1.bf16.msra.mxu0 0
  %602 = vmatprep.subr.bf16.mxu0 0
  %603 = vmatpush1.bf16.msra.mxu0 0
  %604 = vmatprep.subr.bf16.mxu0 0
  %605 = vmatpush1.bf16.msra.mxu0 0
  %606 = vmatprep.subr.bf16.mxu0 0
  %607 = vmatpush1.bf16.msra.mxu0 0
  %608 = vmatprep.mubr.bf16.mxu0 0
  %609 = vmatmul.mubr.bf16.gmra.mrb[0].mxu0 %v574
  %v610 = vpop.f32.mrb[0].mxu0
  %v611 = vadd.f32 0.0, %v610
  %v612 = vpop.f32.mrb[0].mxu0
  %v613 = vpop.f32.mrb[0].mxu0
  %v614 = vpop.f32.mrb[0].mxu0
  %615 = vdwg.mxu0
  %v616 = vadd.f32 %v568, %v611
  %v617 = vxor.u32 %v616, 2147483648
  %v618 = vmul.f32 %v617, 1.442695
  %v619 = vpow.pop %v618
  %v620 = vadd.f32 %v619, 1.0
  %v621 = vrcp.pop %v620
  %v622 = vmul.f32 1.0, %v621
  %v623 = vtanh.pop %v616
  %v624 = vmul.f32 %v622, %v475
  %626 = vrot.lane.b32.xlu0 %v623, 32
  %v627 = vpop.permute.xlu0 %626
  %v629 = vmul.f32 %v622, %v627
  %631 = vrot.lane.b32.xlu0 %v629, 32
  %v632 = vpop.permute.xlu0 %631
  %v634 = vadd.f32 %v624, %v632
  %v635 = vtanh.pop %v634
  %637 = vrot.lane.b32.xlu0 %v635, 32
  %v638 = vpop.permute.xlu0 %637
  %v640 = vmul.f32 %v622, %v638
  %s641 = scalar_lea.vmem %s36, 32
  %v642 = vld [vmem:[%s641] sm:$0xff]
  %v643 = vpack.c.bf16 %v555, %v555
  %645 = vrot.lane.b32.xlu0 %v643, 64
  %v646 = vpop.permute.xlu0 %645
  %v648 = vsel %vm78, %v646, 0
  %650 = vmatprep.subr.bf16.mxu0 0
  %651 = vmatpush1.bf16.msra.mxu0 %v162
  %652 = vmatprep.subr.bf16.mxu0 0
  %653 = vmatpush1.bf16.msra.mxu0 %v163
  %654 = vmatprep.subr.bf16.mxu0 0
  %655 = vmatpush1.bf16.msra.mxu0 0
  %656 = vmatprep.subr.bf16.mxu0 0
  %657 = vmatpush1.bf16.msra.mxu0 0
  %658 = vmatprep.subr.bf16.mxu0 0
  %659 = vmatpush1.bf16.msra.mxu0 0
  %660 = vmatprep.subr.bf16.mxu0 0
  %661 = vmatpush1.bf16.msra.mxu0 0
  %662 = vmatprep.subr.bf16.mxu0 0
  %663 = vmatpush1.bf16.msra.mxu0 0
  %664 = vmatprep.subr.bf16.mxu0 0
  %665 = vmatpush1.bf16.msra.mxu0 0
  %666 = vmatprep.subr.bf16.mxu0 0
  %667 = vmatpush1.bf16.msra.mxu0 0
  %668 = vmatprep.subr.bf16.mxu0 0
  %669 = vmatpush1.bf16.msra.mxu0 0
  %670 = vmatprep.subr.bf16.mxu0 0
  %671 = vmatpush1.bf16.msra.mxu0 0
  %672 = vmatprep.subr.bf16.mxu0 0
  %673 = vmatpush1.bf16.msra.mxu0 0
  %674 = vmatprep.subr.bf16.mxu0 0
  %675 = vmatpush1.bf16.msra.mxu0 0
  %676 = vmatprep.subr.bf16.mxu0 0
  %677 = vmatpush1.bf16.msra.mxu0 0
  %678 = vmatprep.subr.bf16.mxu0 0
  %679 = vmatpush1.bf16.msra.mxu0 0
  %680 = vmatprep.subr.bf16.mxu0 0
  %681 = vmatpush1.bf16.msra.mxu0 0
  %682 = vmatprep.mubr.bf16.mxu0 0
  %683 = vmatmul.mubr.bf16.gmra.mrb[0].mxu0 %v648
  %v684 = vpop.f32.mrb[0].mxu0
  %v685 = vadd.f32 0.0, %v684
  %v686 = vpop.f32.mrb[0].mxu0
  %v687 = vpop.f32.mrb[0].mxu0
  %v688 = vpop.f32.mrb[0].mxu0
  %689 = vdwg.mxu0
  %v690 = vadd.f32 %v642, %v685
  %v691 = vxor.u32 %v690, 2147483648
  %v692 = vmul.f32 %v691, 1.442695
  %v693 = vpow.pop %v692
  %v694 = vadd.f32 %v693, 1.0
  %v695 = vrcp.pop %v694
  %v696 = vmul.f32 1.0, %v695
  %v697 = vtanh.pop %v690
  %v698 = vmul.f32 %v696, %v549
  %700 = vrot.lane.b32.xlu0 %v697, 32
  %v701 = vpop.permute.xlu0 %700
  %v703 = vmul.f32 %v696, %v701
  %705 = vrot.lane.b32.xlu0 %v703, 32
  %v706 = vpop.permute.xlu0 %705
  %v708 = vadd.f32 %v698, %v706
  %v709 = vtanh.pop %v708
  %711 = vrot.lane.b32.xlu0 %v709, 32
  %v712 = vpop.permute.xlu0 %711
  %v714 = vmul.f32 %v696, %v712
  %716 = vrot.lane.b32.xlu0 %v640, 64
  %v717 = vpop.permute.xlu0 %716
  %720 = vrot.lane.b32.xlu0 %v714, 96
  %v721 = vpop.permute.xlu0 %720
  %v723 = vsel %vm78, %v717, %v721
  %s724 = scalar_lea.vmem %s3, 24
  %725 = vst.msk [vmem:[%s724] sm:$0xff] %vm247, %v723
  %s726 = scalar_lea.vmem %s0, 32
  %v727 = vld [vmem:[%s726] sm:$0xff]
  %v728 = vpack.c.bf16 %v640, %v640
  %730 = vrot.lane.b32.xlu0 %v728, 64
  %v731 = vpop.permute.xlu0 %730
  %v733 = vsel %vm78, %v731, 0
  %735 = vmatprep.subr.bf16.mxu0 0
  %736 = vmatpush1.bf16.msra.mxu0 %v74
  %737 = vmatprep.subr.bf16.mxu0 0
  %738 = vmatpush1.bf16.msra.mxu0 %v75
  %739 = vmatprep.subr.bf16.mxu0 0
  %740 = vmatpush1.bf16.msra.mxu0 0
  %741 = vmatprep.subr.bf16.mxu0 0
  %742 = vmatpush1.bf16.msra.mxu0 0
  %743 = vmatprep.subr.bf16.mxu0 0
  %744 = vmatpush1.bf16.msra.mxu0 0
  %745 = vmatprep.subr.bf16.mxu0 0
  %746 = vmatpush1.bf16.msra.mxu0 0
  %747 = vmatprep.subr.bf16.mxu0 0
  %748 = vmatpush1.bf16.msra.mxu0 0
  %749 = vmatprep.subr.bf16.mxu0 0
  %750 = vmatpush1.bf16.msra.mxu0 0
  %751 = vmatprep.subr.bf16.mxu0 0
  %752 = vmatpush1.bf16.msra.mxu0 0
  %753 = vmatprep.subr.bf16.mxu0 0
  %754 = vmatpush1.bf16.msra.mxu0 0
  %755 = vmatprep.subr.bf16.mxu0 0
  %756 = vmatpush1.bf16.msra.mxu0 0
  %757 = vmatprep.subr.bf16.mxu0 0
  %758 = vmatpush1.bf16.msra.mxu0 0
  %759 = vmatprep.subr.bf16.mxu0 0
  %760 = vmatpush1.bf16.msra.mxu0 0
  %761 = vmatprep.subr.bf16.mxu0 0
  %762 = vmatpush1.bf16.msra.mxu0 0
  %763 = vmatprep.subr.bf16.mxu0 0
  %764 = vmatpush1.bf16.msra.mxu0 0
  %765 = vmatprep.subr.bf16.mxu0 0
  %766 = vmatpush1.bf16.msra.mxu0 0
  %767 = vmatprep.mubr.bf16.mxu0 0
  %768 = vmatmul.mubr.bf16.gmra.mrb[0].mxu0 %v733
  %v769 = vpop.f32.mrb[0].mxu0
  %v770 = vadd.f32 0.0, %v769
  %v771 = vpop.f32.mrb[0].mxu0
  %v772 = vpop.f32.mrb[0].mxu0
  %v773 = vpop.f32.mrb[0].mxu0
  %774 = vdwg.mxu0
  %v775 = vadd.f32 %v727, %v770
  %v776 = vxor.u32 %v775, 2147483648
  %v777 = vmul.f32 %v776, 1.442695
  %v778 = vpow.pop %v777
  %v779 = vadd.f32 %v778, 1.0
  %v780 = vrcp.pop %v779
  %v781 = vmul.f32 1.0, %v780
  %v782 = vtanh.pop %v775
  %v783 = vmul.f32 %v781, %v634
  %785 = vrot.lane.b32.xlu0 %v782, 32
  %v786 = vpop.permute.xlu0 %785
  %v788 = vmul.f32 %v781, %v786
  %790 = vrot.lane.b32.xlu0 %v788, 32
  %v791 = vpop.permute.xlu0 %790
  %v793 = vadd.f32 %v783, %v791
  %v794 = vtanh.pop %v793
  %796 = vrot.lane.b32.xlu0 %v794, 32
  %v797 = vpop.permute.xlu0 %796
  %v799 = vmul.f32 %v781, %v797
  %s800 = scalar_lea.vmem %s36, 24
  %v801 = vld [vmem:[%s800] sm:$0xff]
  %v802 = vpack.c.bf16 %v714, %v714
  %804 = vrot.lane.b32.xlu0 %v802, 64
  %v805 = vpop.permute.xlu0 %804
  %v807 = vsel %vm78, %v805, 0
  %809 = vmatprep.subr.bf16.mxu0 0
  %810 = vmatpush1.bf16.msra.mxu0 %v162
  %811 = vmatprep.subr.bf16.mxu0 0
  %812 = vmatpush1.bf16.msra.mxu0 %v163
  %813 = vmatprep.subr.bf16.mxu0 0
  %814 = vmatpush1.bf16.msra.mxu0 0
  %815 = vmatprep.subr.bf16.mxu0 0
  %816 = vmatpush1.bf16.msra.mxu0 0
  %817 = vmatprep.subr.bf16.mxu0 0
  %818 = vmatpush1.bf16.msra.mxu0 0
  %819 = vmatprep.subr.bf16.mxu0 0
  %820 = vmatpush1.bf16.msra.mxu0 0
  %821 = vmatprep.subr.bf16.mxu0 0
  %822 = vmatpush1.bf16.msra.mxu0 0
  %823 = vmatprep.subr.bf16.mxu0 0
  %824 = vmatpush1.bf16.msra.mxu0 0
  %825 = vmatprep.subr.bf16.mxu0 0
  %826 = vmatpush1.bf16.msra.mxu0 0
  %827 = vmatprep.subr.bf16.mxu0 0
  %828 = vmatpush1.bf16.msra.mxu0 0
  %829 = vmatprep.subr.bf16.mxu0 0
  %830 = vmatpush1.bf16.msra.mxu0 0
  %831 = vmatprep.subr.bf16.mxu0 0
  %832 = vmatpush1.bf16.msra.mxu0 0
  %833 = vmatprep.subr.bf16.mxu0 0
  %834 = vmatpush1.bf16.msra.mxu0 0
  %835 = vmatprep.subr.bf16.mxu0 0
  %836 = vmatpush1.bf16.msra.mxu0 0
  %837 = vmatprep.subr.bf16.mxu0 0
  %838 = vmatpush1.bf16.msra.mxu0 0
  %839 = vmatprep.subr.bf16.mxu0 0
  %840 = vmatpush1.bf16.msra.mxu0 0
  %841 = vmatprep.mubr.bf16.mxu0 0
  %842 = vmatmul.mubr.bf16.gmra.mrb[0].mxu0 %v807
  %v843 = vpop.f32.mrb[0].mxu0
  %v844 = vadd.f32 0.0, %v843
  %v845 = vpop.f32.mrb[0].mxu0
  %v846 = vpop.f32.mrb[0].mxu0
  %v847 = vpop.f32.mrb[0].mxu0
  %848 = vdwg.mxu0
  %v849 = vadd.f32 %v801, %v844
  %v850 = vxor.u32 %v849, 2147483648
  %v851 = vmul.f32 %v850, 1.442695
  %v852 = vpow.pop %v851
  %v853 = vadd.f32 %v852, 1.0
  %v854 = vrcp.pop %v853
  %v855 = vmul.f32 1.0, %v854
  %v856 = vtanh.pop %v849
  %v857 = vmul.f32 %v855, %v708
  %859 = vrot.lane.b32.xlu0 %v856, 32
  %v860 = vpop.permute.xlu0 %859
  %v862 = vmul.f32 %v855, %v860
  %864 = vrot.lane.b32.xlu0 %v862, 32
  %v865 = vpop.permute.xlu0 %864
  %v867 = vadd.f32 %v857, %v865
  %v868 = vtanh.pop %v867
  %870 = vrot.lane.b32.xlu0 %v868, 32
  %v871 = vpop.permute.xlu0 %870
  %v873 = vmul.f32 %v855, %v871
  %875 = vrot.lane.b32.xlu0 %v799, 64
  %v876 = vpop.permute.xlu0 %875
  %879 = vrot.lane.b32.xlu0 %v873, 96
  %v880 = vpop.permute.xlu0 %879
  %v882 = vsel %vm78, %v876, %v880
  %s883 = scalar_lea.vmem %s3, 32
  %884 = vst.msk [vmem:[%s883] sm:$0xff] %vm247, %v882
  %s885 = scalar_lea.vmem %s0, 40
  %v886 = vld [vmem:[%s885] sm:$0xff]
  %v887 = vpack.c.bf16 %v799, %v799
  %889 = vrot.lane.b32.xlu0 %v887, 64
  %v890 = vpop.permute.xlu0 %889
  %v892 = vsel %vm78, %v890, 0
  %894 = vmatprep.subr.bf16.mxu0 0
  %895 = vmatpush1.bf16.msra.mxu0 %v74
  %896 = vmatprep.subr.bf16.mxu0 0
  %897 = vmatpush1.bf16.msra.mxu0 %v75
  %898 = vmatprep.subr.bf16.mxu0 0
  %899 = vmatpush1.bf16.msra.mxu0 0
  %900 = vmatprep.subr.bf16.mxu0 0
  %901 = vmatpush1.bf16.msra.mxu0 0
  %902 = vmatprep.subr.bf16.mxu0 0
  %903 = vmatpush1.bf16.msra.mxu0 0
  %904 = vmatprep.subr.bf16.mxu0 0
  %905 = vmatpush1.bf16.msra.mxu0 0
  %906 = vmatprep.subr.bf16.mxu0 0
  %907 = vmatpush1.bf16.msra.mxu0 0
  %908 = vmatprep.subr.bf16.mxu0 0
  %909 = vmatpush1.bf16.msra.mxu0 0
  %910 = vmatprep.subr.bf16.mxu0 0
  %911 = vmatpush1.bf16.msra.mxu0 0
  %912 = vmatprep.subr.bf16.mxu0 0
  %913 = vmatpush1.bf16.msra.mxu0 0
  %914 = vmatprep.subr.bf16.mxu0 0
  %915 = vmatpush1.bf16.msra.mxu0 0
  %916 = vmatprep.subr.bf16.mxu0 0
  %917 = vmatpush1.bf16.msra.mxu0 0
  %918 = vmatprep.subr.bf16.mxu0 0
  %919 = vmatpush1.bf16.msra.mxu0 0
  %920 = vmatprep.subr.bf16.mxu0 0
  %921 = vmatpush1.bf16.msra.mxu0 0
  %922 = vmatprep.subr.bf16.mxu0 0
  %923 = vmatpush1.bf16.msra.mxu0 0
  %924 = vmatprep.subr.bf16.mxu0 0
  %925 = vmatpush1.bf16.msra.mxu0 0
  %926 = vmatprep.mubr.bf16.mxu0 0
  %927 = vmatmul.mubr.bf16.gmra.mrb[0].mxu0 %v892
  %v928 = vpop.f32.mrb[0].mxu0
  %v929 = vadd.f32 0.0, %v928
  %v930 = vpop.f32.mrb[0].mxu0
  %v931 = vpop.f32.mrb[0].mxu0
  %v932 = vpop.f32.mrb[0].mxu0
  %933 = vdwg.mxu0
  %v934 = vadd.f32 %v886, %v929
  %v935 = vxor.u32 %v934, 2147483648
  %v936 = vmul.f32 %v935, 1.442695
  %v937 = vpow.pop %v936
  %v938 = vadd.f32 %v937, 1.0
  %v939 = vrcp.pop %v938
  %v940 = vmul.f32 1.0, %v939
  %v941 = vtanh.pop %v934
  %v942 = vmul.f32 %v940, %v793
  %944 = vrot.lane.b32.xlu0 %v941, 32
  %v945 = vpop.permute.xlu0 %944
  %v947 = vmul.f32 %v940, %v945
  %949 = vrot.lane.b32.xlu0 %v947, 32
  %v950 = vpop.permute.xlu0 %949
  %v952 = vadd.f32 %v942, %v950
  %v953 = vtanh.pop %v952
  %955 = vrot.lane.b32.xlu0 %v953, 32
  %v956 = vpop.permute.xlu0 %955
  %v958 = vmul.f32 %v940, %v956
  %s959 = scalar_lea.vmem %s36, 16
  %v960 = vld [vmem:[%s959] sm:$0xff]
  %v961 = vpack.c.bf16 %v873, %v873
  %963 = vrot.lane.b32.xlu0 %v961, 64
  %v964 = vpop.permute.xlu0 %963
  %v966 = vsel %vm78, %v964, 0
  %968 = vmatprep.subr.bf16.mxu0 0
  %969 = vmatpush1.bf16.msra.mxu0 %v162
  %970 = vmatprep.subr.bf16.mxu0 0
  %971 = vmatpush1.bf16.msra.mxu0 %v163
  %972 = vmatprep.subr.bf16.mxu0 0
  %973 = vmatpush1.bf16.msra.mxu0 0
  %974 = vmatprep.subr.bf16.mxu0 0
  %975 = vmatpush1.bf16.msra.mxu0 0
  %976 = vmatprep.subr.bf16.mxu0 0
  %977 = vmatpush1.bf16.msra.mxu0 0
  %978 = vmatprep.subr.bf16.mxu0 0
  %979 = vmatpush1.bf16.msra.mxu0 0
  %980 = vmatprep.subr.bf16.mxu0 0
  %981 = vmatpush1.bf16.msra.mxu0 0
  %982 = vmatprep.subr.bf16.mxu0 0
  %983 = vmatpush1.bf16.msra.mxu0 0
  %984 = vmatprep.subr.bf16.mxu0 0
  %985 = vmatpush1.bf16.msra.mxu0 0
  %986 = vmatprep.subr.bf16.mxu0 0
  %987 = vmatpush1.bf16.msra.mxu0 0
  %988 = vmatprep.subr.bf16.mxu0 0
  %989 = vmatpush1.bf16.msra.mxu0 0
  %990 = vmatprep.subr.bf16.mxu0 0
  %991 = vmatpush1.bf16.msra.mxu0 0
  %992 = vmatprep.subr.bf16.mxu0 0
  %993 = vmatpush1.bf16.msra.mxu0 0
  %994 = vmatprep.subr.bf16.mxu0 0
  %995 = vmatpush1.bf16.msra.mxu0 0
  %996 = vmatprep.subr.bf16.mxu0 0
  %997 = vmatpush1.bf16.msra.mxu0 0
  %998 = vmatprep.subr.bf16.mxu0 0
  %999 = vmatpush1.bf16.msra.mxu0 0
  %1000 = vmatprep.mubr.bf16.mxu0 0
  %1001 = vmatmul.mubr.bf16.gmra.mrb[0].mxu0 %v966
  %v1002 = vpop.f32.mrb[0].mxu0
  %v1003 = vadd.f32 0.0, %v1002
  %v1004 = vpop.f32.mrb[0].mxu0
  %v1005 = vpop.f32.mrb[0].mxu0
  %v1006 = vpop.f32.mrb[0].mxu0
  %1007 = vdwg.mxu0
  %v1008 = vadd.f32 %v960, %v1003
  %v1009 = vxor.u32 %v1008, 2147483648
  %v1010 = vmul.f32 %v1009, 1.442695
  %v1011 = vpow.pop %v1010
  %v1012 = vadd.f32 %v1011, 1.0
  %v1013 = vrcp.pop %v1012
  %v1014 = vmul.f32 1.0, %v1013
  %v1015 = vtanh.pop %v1008
  %v1016 = vmul.f32 %v1014, %v867
  %1018 = vrot.lane.b32.xlu0 %v1015, 32
  %v1019 = vpop.permute.xlu0 %1018
  %v1021 = vmul.f32 %v1014, %v1019
  %1023 = vrot.lane.b32.xlu0 %v1021, 32
  %v1024 = vpop.permute.xlu0 %1023
  %v1026 = vadd.f32 %v1016, %v1024
  %v1027 = vtanh.pop %v1026
  %1029 = vrot.lane.b32.xlu0 %v1027, 32
  %v1030 = vpop.permute.xlu0 %1029
  %v1032 = vmul.f32 %v1014, %v1030
  %1034 = vrot.lane.b32.xlu0 %v958, 64
  %v1035 = vpop.permute.xlu0 %1034
  %1038 = vrot.lane.b32.xlu0 %v1032, 96
  %v1039 = vpop.permute.xlu0 %1038
  %v1041 = vsel %vm78, %v1035, %v1039
  %s1042 = scalar_lea.vmem %s3, 40
  %1043 = vst.msk [vmem:[%s1042] sm:$0xff] %vm247, %v1041
  %s1044 = scalar_lea.vmem %s0, 48
  %v1045 = vld [vmem:[%s1044] sm:$0xff]
  %v1046 = vpack.c.bf16 %v958, %v958
  %1048 = vrot.lane.b32.xlu0 %v1046, 64
  %v1049 = vpop.permute.xlu0 %1048
  %v1051 = vsel %vm78, %v1049, 0
  %1053 = vmatprep.subr.bf16.mxu0 0
  %1054 = vmatpush1.bf16.msra.mxu0 %v74
  %1055 = vmatprep.subr.bf16.mxu0 0
  %1056 = vmatpush1.bf16.msra.mxu0 %v75
  %1057 = vmatprep.subr.bf16.mxu0 0
  %1058 = vmatpush1.bf16.msra.mxu0 0
  %1059 = vmatprep.subr.bf16.mxu0 0
  %1060 = vmatpush1.bf16.msra.mxu0 0
  %1061 = vmatprep.subr.bf16.mxu0 0
  %1062 = vmatpush1.bf16.msra.mxu0 0
  %1063 = vmatprep.subr.bf16.mxu0 0
  %1064 = vmatpush1.bf16.msra.mxu0 0
  %1065 = vmatprep.subr.bf16.mxu0 0
  %1066 = vmatpush1.bf16.msra.mxu0 0
  %1067 = vmatprep.subr.bf16.mxu0 0
  %1068 = vmatpush1.bf16.msra.mxu0 0
  %1069 = vmatprep.subr.bf16.mxu0 0
  %1070 = vmatpush1.bf16.msra.mxu0 0
  %1071 = vmatprep.subr.bf16.mxu0 0
  %1072 = vmatpush1.bf16.msra.mxu0 0
  %1073 = vmatprep.subr.bf16.mxu0 0
  %1074 = vmatpush1.bf16.msra.mxu0 0
  %1075 = vmatprep.subr.bf16.mxu0 0
  %1076 = vmatpush1.bf16.msra.mxu0 0
  %1077 = vmatprep.subr.bf16.mxu0 0
  %1078 = vmatpush1.bf16.msra.mxu0 0
  %1079 = vmatprep.subr.bf16.mxu0 0
  %1080 = vmatpush1.bf16.msra.mxu0 0
  %1081 = vmatprep.subr.bf16.mxu0 0
  %1082 = vmatpush1.bf16.msra.mxu0 0
  %1083 = vmatprep.subr.bf16.mxu0 0
  %1084 = vmatpush1.bf16.msra.mxu0 0
  %1085 = vmatprep.mubr.bf16.mxu0 0
  %1086 = vmatmul.mubr.bf16.gmra.mrb[0].mxu0 %v1051
  %v1087 = vpop.f32.mrb[0].mxu0
  %v1088 = vadd.f32 0.0, %v1087
  %v1089 = vpop.f32.mrb[0].mxu0
  %v1090 = vpop.f32.mrb[0].mxu0
  %v1091 = vpop.f32.mrb[0].mxu0
  %1092 = vdwg.mxu0
  %v1093 = vadd.f32 %v1045, %v1088
  %v1094 = vxor.u32 %v1093, 2147483648
  %v1095 = vmul.f32 %v1094, 1.442695
  %v1096 = vpow.pop %v1095
  %v1097 = vadd.f32 %v1096, 1.0
  %v1098 = vrcp.pop %v1097
  %v1099 = vmul.f32 1.0, %v1098
  %v1100 = vtanh.pop %v1093
  %v1101 = vmul.f32 %v1099, %v952
  %1103 = vrot.lane.b32.xlu0 %v1100, 32
  %v1104 = vpop.permute.xlu0 %1103
  %v1106 = vmul.f32 %v1099, %v1104
  %1108 = vrot.lane.b32.xlu0 %v1106, 32
  %v1109 = vpop.permute.xlu0 %1108
  %v1111 = vadd.f32 %v1101, %v1109
  %v1112 = vtanh.pop %v1111
  %1114 = vrot.lane.b32.xlu0 %v1112, 32
  %v1115 = vpop.permute.xlu0 %1114
  %v1117 = vmul.f32 %v1099, %v1115
  %s1118 = scalar_lea.vmem %s36, 8
  %v1119 = vld [vmem:[%s1118] sm:$0xff]
  %v1120 = vpack.c.bf16 %v1032, %v1032
  %1122 = vrot.lane.b32.xlu0 %v1120, 64
  %v1123 = vpop.permute.xlu0 %1122
  %v1125 = vsel %vm78, %v1123, 0
  %1127 = vmatprep.subr.bf16.mxu0 0
  %1128 = vmatpush1.bf16.msra.mxu0 %v162
  %1129 = vmatprep.subr.bf16.mxu0 0
  %1130 = vmatpush1.bf16.msra.mxu0 %v163
  %1131 = vmatprep.subr.bf16.mxu0 0
  %1132 = vmatpush1.bf16.msra.mxu0 0
  %1133 = vmatprep.subr.bf16.mxu0 0
  %1134 = vmatpush1.bf16.msra.mxu0 0
  %1135 = vmatprep.subr.bf16.mxu0 0
  %1136 = vmatpush1.bf16.msra.mxu0 0
  %1137 = vmatprep.subr.bf16.mxu0 0
  %1138 = vmatpush1.bf16.msra.mxu0 0
  %1139 = vmatprep.subr.bf16.mxu0 0
  %1140 = vmatpush1.bf16.msra.mxu0 0
  %1141 = vmatprep.subr.bf16.mxu0 0
  %1142 = vmatpush1.bf16.msra.mxu0 0
  %1143 = vmatprep.subr.bf16.mxu0 0
  %1144 = vmatpush1.bf16.msra.mxu0 0
  %1145 = vmatprep.subr.bf16.mxu0 0
  %1146 = vmatpush1.bf16.msra.mxu0 0
  %1147 = vmatprep.subr.bf16.mxu0 0
  %1148 = vmatpush1.bf16.msra.mxu0 0
  %1149 = vmatprep.subr.bf16.mxu0 0
  %1150 = vmatpush1.bf16.msra.mxu0 0
  %1151 = vmatprep.subr.bf16.mxu0 0
  %1152 = vmatpush1.bf16.msra.mxu0 0
  %1153 = vmatprep.subr.bf16.mxu0 0
  %1154 = vmatpush1.bf16.msra.mxu0 0
  %1155 = vmatprep.subr.bf16.mxu0 0
  %1156 = vmatpush1.bf16.msra.mxu0 0
  %1157 = vmatprep.subr.bf16.mxu0 0
  %1158 = vmatpush1.bf16.msra.mxu0 0
  %1159 = vmatprep.mubr.bf16.mxu0 0
  %1160 = vmatmul.mubr.bf16.gmra.mrb[0].mxu0 %v1125
  %v1161 = vpop.f32.mrb[0].mxu0
  %v1162 = vadd.f32 0.0, %v1161
  %v1163 = vpop.f32.mrb[0].mxu0
  %v1164 = vpop.f32.mrb[0].mxu0
  %v1165 = vpop.f32.mrb[0].mxu0
  %1166 = vdwg.mxu0
  %v1167 = vadd.f32 %v1119, %v1162
  %v1168 = vxor.u32 %v1167, 2147483648
  %v1169 = vmul.f32 %v1168, 1.442695
  %v1170 = vpow.pop %v1169
  %v1171 = vadd.f32 %v1170, 1.0
  %v1172 = vrcp.pop %v1171
  %v1173 = vmul.f32 1.0, %v1172
  %v1174 = vtanh.pop %v1167
  %v1175 = vmul.f32 %v1173, %v1026
  %1177 = vrot.lane.b32.xlu0 %v1174, 32
  %v1178 = vpop.permute.xlu0 %1177
  %v1180 = vmul.f32 %v1173, %v1178
  %1182 = vrot.lane.b32.xlu0 %v1180, 32
  %v1183 = vpop.permute.xlu0 %1182
  %v1185 = vadd.f32 %v1175, %v1183
  %v1186 = vtanh.pop %v1185
  %1188 = vrot.lane.b32.xlu0 %v1186, 32
  %v1189 = vpop.permute.xlu0 %1188
  %v1191 = vmul.f32 %v1173, %v1189
  %1193 = vrot.lane.b32.xlu0 %v1117, 64
  %v1194 = vpop.permute.xlu0 %1193
  %1197 = vrot.lane.b32.xlu0 %v1191, 96
  %v1198 = vpop.permute.xlu0 %1197
  %v1200 = vsel %vm78, %v1194, %v1198
  %s1201 = scalar_lea.vmem %s3, 48
  %1202 = vst.msk [vmem:[%s1201] sm:$0xff] %vm247, %v1200
  %s1203 = scalar_lea.vmem %s0, 56
  %v1204 = vld [vmem:[%s1203] sm:$0xff]
  %v1205 = vpack.c.bf16 %v1117, %v1117
  %1207 = vrot.lane.b32.xlu0 %v1205, 64
  %v1208 = vpop.permute.xlu0 %1207
  %v1210 = vsel %vm78, %v1208, 0
  %1212 = vmatprep.subr.bf16.mxu0 0
  %1213 = vmatpush1.bf16.msra.mxu0 %v74
  %1214 = vmatprep.subr.bf16.mxu0 0
  %1215 = vmatpush1.bf16.msra.mxu0 %v75
  %1216 = vmatprep.subr.bf16.mxu0 0
  %1217 = vmatpush1.bf16.msra.mxu0 0
  %1218 = vmatprep.subr.bf16.mxu0 0
  %1219 = vmatpush1.bf16.msra.mxu0 0
  %1220 = vmatprep.subr.bf16.mxu0 0
  %1221 = vmatpush1.bf16.msra.mxu0 0
  %1222 = vmatprep.subr.bf16.mxu0 0
  %1223 = vmatpush1.bf16.msra.mxu0 0
  %1224 = vmatprep.subr.bf16.mxu0 0
  %1225 = vmatpush1.bf16.msra.mxu0 0
  %1226 = vmatprep.subr.bf16.mxu0 0
  %1227 = vmatpush1.bf16.msra.mxu0 0
  %1228 = vmatprep.subr.bf16.mxu0 0
  %1229 = vmatpush1.bf16.msra.mxu0 0
  %1230 = vmatprep.subr.bf16.mxu0 0
  %1231 = vmatpush1.bf16.msra.mxu0 0
  %1232 = vmatprep.subr.bf16.mxu0 0
  %1233 = vmatpush1.bf16.msra.mxu0 0
  %1234 = vmatprep.subr.bf16.mxu0 0
  %1235 = vmatpush1.bf16.msra.mxu0 0
  %1236 = vmatprep.subr.bf16.mxu0 0
  %1237 = vmatpush1.bf16.msra.mxu0 0
  %1238 = vmatprep.subr.bf16.mxu0 0
  %1239 = vmatpush1.bf16.msra.mxu0 0
  %1240 = vmatprep.subr.bf16.mxu0 0
  %1241 = vmatpush1.bf16.msra.mxu0 0
  %1242 = vmatprep.subr.bf16.mxu0 0
  %1243 = vmatpush1.bf16.msra.mxu0 0
  %1244 = vmatprep.mubr.bf16.mxu0 0
  %1245 = vmatmul.mubr.bf16.gmra.mrb[0].mxu0 %v1210
  %v1246 = vpop.f32.mrb[0].mxu0
  %v1247 = vadd.f32 0.0, %v1246
  %v1248 = vpop.f32.mrb[0].mxu0
  %v1249 = vpop.f32.mrb[0].mxu0
  %v1250 = vpop.f32.mrb[0].mxu0
  %1251 = vdwg.mxu0
  %v1252 = vadd.f32 %v1204, %v1247
  %v1253 = vxor.u32 %v1252, 2147483648
  %v1254 = vmul.f32 %v1253, 1.442695
  %v1255 = vpow.pop %v1254
  %v1256 = vadd.f32 %v1255, 1.0
  %v1257 = vrcp.pop %v1256
  %v1258 = vmul.f32 1.0, %v1257
  %v1259 = vtanh.pop %v1252
  %v1260 = vmul.f32 %v1258, %v1111
  %1262 = vrot.lane.b32.xlu0 %v1259, 32
  %v1263 = vpop.permute.xlu0 %1262
  %v1265 = vmul.f32 %v1258, %v1263
  %1267 = vrot.lane.b32.xlu0 %v1265, 32
  %v1268 = vpop.permute.xlu0 %1267
  %v1270 = vadd.f32 %v1260, %v1268
  %v1271 = vtanh.pop %v1270
  %1273 = vrot.lane.b32.xlu0 %v1271, 32
  %v1274 = vpop.permute.xlu0 %1273
  %v1276 = vmul.f32 %v1258, %v1274
  %v1277 = vld [vmem:[%s36] sm:$0xff]
  %v1278 = vpack.c.bf16 %v1191, %v1191
  %1280 = vrot.lane.b32.xlu0 %v1278, 64
  %v1281 = vpop.permute.xlu0 %1280
  %v1283 = vsel %vm78, %v1281, 0
  %1285 = vmatprep.subr.bf16.mxu0 0
  %1286 = vmatpush1.bf16.msra.mxu0 %v162
  %1287 = vmatprep.subr.bf16.mxu0 0
  %1288 = vmatpush1.bf16.msra.mxu0 %v163
  %1289 = vmatprep.subr.bf16.mxu0 0
  %1290 = vmatpush1.bf16.msra.mxu0 0
  %1291 = vmatprep.subr.bf16.mxu0 0
  %1292 = vmatpush1.bf16.msra.mxu0 0
  %1293 = vmatprep.subr.bf16.mxu0 0
  %1294 = vmatpush1.bf16.msra.mxu0 0
  %1295 = vmatprep.subr.bf16.mxu0 0
  %1296 = vmatpush1.bf16.msra.mxu0 0
  %1297 = vmatprep.subr.bf16.mxu0 0
  %1298 = vmatpush1.bf16.msra.mxu0 0
  %1299 = vmatprep.subr.bf16.mxu0 0
  %1300 = vmatpush1.bf16.msra.mxu0 0
  %1301 = vmatprep.subr.bf16.mxu0 0
  %1302 = vmatpush1.bf16.msra.mxu0 0
  %1303 = vmatprep.subr.bf16.mxu0 0
  %1304 = vmatpush1.bf16.msra.mxu0 0
  %1305 = vmatprep.subr.bf16.mxu0 0
  %1306 = vmatpush1.bf16.msra.mxu0 0
  %1307 = vmatprep.subr.bf16.mxu0 0
  %1308 = vmatpush1.bf16.msra.mxu0 0
  %1309 = vmatprep.subr.bf16.mxu0 0
  %1310 = vmatpush1.bf16.msra.mxu0 0
  %1311 = vmatprep.subr.bf16.mxu0 0
  %1312 = vmatpush1.bf16.msra.mxu0 0
  %1313 = vmatprep.subr.bf16.mxu0 0
  %1314 = vmatpush1.bf16.msra.mxu0 0
  %1315 = vmatprep.subr.bf16.mxu0 0
  %1316 = vmatpush1.bf16.msra.mxu0 0
  %1317 = vmatprep.mubr.bf16.mxu0 0
  %1318 = vmatmul.mubr.bf16.gmra.mrb[0].mxu0 %v1283
  %v1319 = vpop.f32.mrb[0].mxu0
  %v1320 = vadd.f32 0.0, %v1319
  %v1321 = vpop.f32.mrb[0].mxu0
  %v1322 = vpop.f32.mrb[0].mxu0
  %v1323 = vpop.f32.mrb[0].mxu0
  %1324 = vdwg.mxu0
  %v1325 = vadd.f32 %v1277, %v1320
  %v1326 = vxor.u32 %v1325, 2147483648
  %v1327 = vmul.f32 %v1326, 1.442695
  %v1328 = vpow.pop %v1327
  %v1329 = vadd.f32 %v1328, 1.0
  %v1330 = vrcp.pop %v1329
  %v1331 = vmul.f32 1.0, %v1330
  %v1332 = vtanh.pop %v1325
  %v1333 = vmul.f32 %v1331, %v1185
  %1335 = vrot.lane.b32.xlu0 %v1332, 32
  %v1336 = vpop.permute.xlu0 %1335
  %v1338 = vmul.f32 %v1331, %v1336
  %1340 = vrot.lane.b32.xlu0 %v1338, 32
  %v1341 = vpop.permute.xlu0 %1340
  %v1343 = vadd.f32 %v1333, %v1341
  %v1344 = vtanh.pop %v1343
  %1346 = vrot.lane.b32.xlu0 %v1344, 32
  %v1347 = vpop.permute.xlu0 %1346
  %v1349 = vmul.f32 %v1331, %v1347
  %1351 = vrot.lane.b32.xlu0 %v1276, 64
  %v1352 = vpop.permute.xlu0 %1351
  %1355 = vrot.lane.b32.xlu0 %v1349, 96
  %v1356 = vpop.permute.xlu0 %1355
  %v1358 = vsel %vm78, %v1352, %v1356
  %s1359 = scalar_lea.vmem %s3, 56
  %1360 = vst.msk [vmem:[%s1359] sm:$0xff] %vm247, %v1358
  %1361 = vst.msk [vmem:[#allocation2] sm:$0xff] %vm78, %v1352
  %1363 = vrot.lane.b32.xlu0 %v1270, 96
  %v1364 = vpop.permute.xlu0 %1363
  %1366 = vst.msk [vmem:[#allocation3] sm:$0xff] %vm78, %v1364
  %1367 = vrot.lane.b32.xlu0 %v1349, 64
  %v1368 = vpop.permute.xlu0 %1367
  %1370 = vst.msk [vmem:[%s60] sm:$0xff] %vm78, %v1368
  %1372 = vrot.lane.b32.xlu0 %v1343, 96
  %v1373 = vpop.permute.xlu0 %1372
  %1375 = vst.msk [vmem:[%s62] sm:$0xff] %vm78, %v1373
  // Predicated region
  $region18: #{blstm_forward.1} parent=0 // pred_check
    _
  $region19: #{blstm_forward.1} parent=0 // pred_check_branch
    %1377 = sbr.rel (0) target = $region21
  $region20: #{blstm_forward.1} parent=0 // pred_region
    _
  $region21: #{blstm_forward.1} parent=0 // pred_fallthru
    _
  // Predicated region
  $region22: #{blstm_forward.1} parent=0 // pred_check
    _
  $region23: #{blstm_forward.1} parent=0 // pred_check_branch
    %1379 = sbr.rel (0) target = $region25
  $region24: #{blstm_forward.1} parent=0 // pred_region
    _
  $region25: #{blstm_forward.1} parent=0 // pred_fallthru
    _

</llo_original>
